<compile_context>
chip_gen: v5e
topology: v5e:2x2
jax: 0.10.0
libtpu: 0.0.40
codegen_flags: <defaults>
</compile_context>

<pallas_src>
import functools

import numpy as np
import jax
import jax.numpy as jnp
from jax.experimental import pallas as pl
from jax.experimental.pallas import tpu as pltpu


POOL = 64            # AdaptiveMaxPool1d output size (fixed by the module)
_BT_SPLIT_MIN = 16   # below this batch: single grid step (full-dim blocks)
_BT_CAP = 32         # max images per grid step (VMEM stays << limits)


def _shift_left(v, off):
    """result[:, n] = v[:, n + off] for n + off < N; the wrapped tail lanes
    hold finite garbage that no valid conv output ever reads.  Built from
    two static slices + a lane concat (a rotation -- proven to lower)."""
    if off == 0:
        return v
    return jnp.concatenate([v[:, off:], v[:, :off]], axis=1)


def _fused_cnn_kernel(x_ref, w1_ref, b1_ref, w2_ref, b2_ref, mask_ref,
                      wl_ref, bl_ref, out_ref, *, bt, hwp, taps, bins):
    """Fused forward for a block of `bt` images.  Layout: channels on the
    sublane axis, (image, pixel) on the lane axis (image b occupies lanes
    [b*hwp, (b+1)*hwp))."""
    x = x_ref[...]                                     # (Cp, N) bf16, N=bt*hwp

    # conv1: 9 taps folded into K -> one MXU matmul over the whole block.
    rhs1 = jnp.concatenate([_shift_left(x, off) for off in taps], axis=0)
    a1 = jnp.dot(w1_ref[...], rhs1, preferred_element_type=jnp.float32)
    a1 = jnp.maximum(a1 + b1_ref[...], 0.0).astype(jnp.bfloat16)    # (C1, N)

    # conv2: same trick, K = 9*C1.
    rhs2 = jnp.concatenate([_shift_left(a1, off) for off in taps], axis=0)
    a2 = jnp.dot(w2_ref[...], rhs2, preferred_element_type=jnp.float32)
    a2 = jnp.maximum(a2 + b2_ref[...], 0.0)                         # (C2, N) f32

    # Zero every lane that is not a valid conv2 output.  Garbage lanes are
    # finite (they tap real neighbouring data), ReLU makes valid values >= 0
    # and every pool bin contains >= 1 valid element, so 0-masking cannot
    # change any bin max.
    a2m = a2 * mask_ref[...]

    # Move images from lanes onto sublanes, per channel: chan[c] is
    # (bt, hwp), so each pool window reduces ALL images in one XLU op.
    c2 = a2m.shape[0]
    chan = []
    for c in range(c2):
        rows = [a2m[c:c + 1, b * hwp:(b + 1) * hwp] for b in range(bt)]
        chan.append(rows[0] if bt == 1 else jnp.concatenate(rows, axis=0))

    # AdaptiveMaxPool1d(64): each bin = max over 1-2 static lane windows
    # (windows may include masked lanes -- harmless, see above).
    cols = []
    for wins in bins:
        acc = None
        for (c, ls, le) in wins:
            m = jnp.max(chan[c][:, ls:le], axis=1, keepdims=True)   # (bt, 1)
            acc = m if acc is None else jnp.maximum(acc, m)
        cols.append(acc)
    pooled = jnp.concatenate(cols, axis=1)                          # (bt, 64)

    # Linear on the MXU; lane-dense (bt, Dp) store.
    out_ref[...] = (jnp.dot(pooled.astype(jnp.bfloat16), wl_ref[...],
                            preferred_element_type=jnp.float32)
                    + bl_ref[...])


def app4rs_task2_forward(x_nchw, params):
    w1, b1, w2, b2, wl, bl = (params[k] for k in ("w1", "b1", "w2", "b2",
                                                  "wl", "bl"))
    B, C, H, W = x_nchw.shape
    # Invariant the lane layout relies on: the deepest tap of the deepest
    # valid conv2 output reads input lane (H-1)*W + (W-1) = H*W - 1, i.e.
    # valid outputs never tap past an image's last real lane.  Needs H,W>=5.
    assert H >= 5 and W >= 5, "image must be at least 5x5"
    C1 = w1.shape[-1]                    # 16
    C2 = w2.shape[-1]                    # 3
    D = wl.shape[-1]                     # output_dim
    HW = H * W
    Ho2, Wo2 = H - 4, W - 4
    Lc = Ho2 * Wo2
    L = C2 * Lc

    # --- batch blocking ------------------------------------------------------
    if B >= _BT_SPLIT_MIN:
        nblk = max(2, -(-B // _BT_CAP))          # >= 2 blocks -> v7x megacore
        Bt = -(-B // nblk)
        Bt = ((Bt + 7) // 8) * 8                 # sublane-aligned output block
    else:
        nblk, Bt = 1, B                          # single step: full-dim blocks
    Bp = nblk * Bt

    Cp = ((C + 7) // 8) * 8                      # pad Cin to a sublane multiple
    HWp = ((HW + 127) // 128) * 128              # pad per-image lanes to 128
    Dp = ((D + 127) // 128) * 128                # lane-dense output width

    # --- input: (B,C,H,W) f32 -> (Cp, Bp*HWp) bf16, image b at lane b*HWp ----
    x3 = x_nchw.reshape(B, C, HW)
    x3 = jnp.pad(x3, ((0, Bp - B), (0, Cp - C), (0, HWp - HW)))
    xk = jnp.transpose(x3, (1, 0, 2)).reshape(Cp, Bp * HWp).astype(jnp.bfloat16)

    # --- conv weights: (kh,kw,ci,co) -> (co, 9*Cin) stacked tap-major --------
    w1s = jnp.pad(jnp.transpose(w1, (3, 0, 1, 2)),
                  ((0, 0), (0, 0), (0, 0), (0, Cp - C)))
    w1s = w1s.reshape(C1, 9 * Cp).astype(jnp.bfloat16)
    w2s = jnp.transpose(w2, (3, 0, 1, 2)).reshape(C2, 9 * C1).astype(jnp.bfloat16)
    b1c = b1.reshape(C1, 1).astype(jnp.float32)
    b2c = b2.reshape(C2, 1).astype(jnp.float32)

    # --- linear weights, padded to 128 output lanes --------------------------
    wl_p = jnp.pad(wl, ((0, 0), (0, Dp - D))).astype(jnp.bfloat16)
    bl_p = jnp.pad(bl.reshape(1, D), ((0, 0), (0, Dp - D))).astype(jnp.float32)

    # --- static tap offsets on the flattened per-image grid ------------------
    taps = tuple(kh * W + kw for kh in range(3) for kw in range(3))

    # --- valid-lane mask (1 where a lane is a valid conv2 output) ------------
    mimg = np.zeros((HWp,), np.float32)
    for r in range(Ho2):
        mimg[r * W:r * W + Wo2] = 1.0
    mask = jnp.asarray(np.tile(mimg, Bt)[None, :])            # (1, Bt*HWp)

    # --- AdaptiveMaxPool1d(64): static per-bin lane windows ------------------
    # flat idx c*Lc + r*Wo2 + col  <->  lane r*W + col of channel c (monotone),
    # so a flat range maps to one masked lane window per channel it touches.
    bins = []
    for i in range(POOL):
        s = (i * L) // POOL
        e = -(-((i + 1) * L) // POOL)
        wins = []
        for c in range(C2):
            cs, ce = max(s, c * Lc), min(e, (c + 1) * Lc)
            if cs >= ce:
                continue
            ps, pe = cs - c * Lc, ce - c * Lc
            ls = (ps // Wo2) * W + (ps % Wo2)
            le = ((pe - 1) // Wo2) * W + ((pe - 1) % Wo2) + 1
            wins.append((c, ls, le))
        bins.append(tuple(wins))
    bins = tuple(bins)

    kernel = functools.partial(_fused_cnn_kernel, bt=Bt, hwp=HWp,
                               taps=taps, bins=bins)
    out = pl.pallas_call(
        kernel,
        out_shape=jax.ShapeDtypeStruct((Bp, Dp), jnp.float32),
        grid=(nblk,),
        in_specs=[
            pl.BlockSpec((Cp, Bt * HWp), lambda i: (0, i)),
            pl.BlockSpec((C1, 9 * Cp), lambda i: (0, 0)),
            pl.BlockSpec((C1, 1), lambda i: (0, 0)),
            pl.BlockSpec((C2, 9 * C1), lambda i: (0, 0)),
            pl.BlockSpec((C2, 1), lambda i: (0, 0)),
            pl.BlockSpec((1, Bt * HWp), lambda i: (0, 0)),
            pl.BlockSpec((POOL, Dp), lambda i: (0, 0)),
            pl.BlockSpec((1, Dp), lambda i: (0, 0)),
        ],
        out_specs=pl.BlockSpec((Bt, Dp), lambda i: (i, 0)),
        compiler_params=pltpu.CompilerParams(
            dimension_semantics=("parallel",)),
    )(xk, w1s, b1c, w2s, b2c, mask, wl_p, bl_p)

    # Padded batch rows (all-zero inputs) produce finite garbage rows that are
    # sliced away here; pooling/linear never mix rows, so they cannot leak.
    return out[:B, :D]


# -----------------------------------------------------------------------------
# Deterministic parameter init (shapes from the module __init__)
# -----------------------------------------------------------------------------
def init_params(key, c, output_dim):
    k1, k2, k3, k4, k5, k6 = jax.random.split(key, 6)
    b1nd = 1.0 / np.sqrt(c * 9)
    b2nd = 1.0 / np.sqrt(16 * 9)
    b3nd = 1.0 / np.sqrt(64)
    return dict(
        w1=jax.random.uniform(k1, (3, 3, c, 16), jnp.float32, -b1nd, b1nd),
        b1=jax.random.uniform(k2, (16,), jnp.float32, -b1nd, b1nd),
        w2=jax.random.uniform(k3, (3, 3, 16, 3), jnp.float32, -b2nd, b2nd),
        b2=jax.random.uniform(k4, (3,), jnp.float32, -b2nd, b2nd),
        wl=jax.random.uniform(k5, (64, output_dim), jnp.float32, -b3nd, b3nd),
        bl=jax.random.uniform(k6, (output_dim,), jnp.float32, -b3nd, b3nd),
    )


# -----------------------------------------------------------------------------
# Pure-JAX reference (mirrors the PyTorch forward).  bf16_operands=True rounds
# the matmul/conv operands to bf16 (f32 accumulation), matching the kernel's
# MXU arithmetic, so it can be compared at tight tolerance.
# -----------------------------------------------------------------------------
def reference_forward(x_nchw, params, *, bf16_operands=False):
    def cast(v):
        return v.astype(jnp.bfloat16) if bf16_operands else v
    prec = None if bf16_operands else jax.lax.Precision.HIGHEST
    w1 = jnp.transpose(params["w1"], (3, 2, 0, 1))      # OIHW
    w2 = jnp.transpose(params["w2"], (3, 2, 0, 1))
    dn = ("NCHW", "OIHW", "NCHW")
    a = jax.lax.conv_general_dilated(cast(x_nchw), cast(w1), (1, 1), "VALID",
                                     dimension_numbers=dn, precision=prec,
                                     preferred_element_type=jnp.float32)
    a = jnp.maximum(a + params["b1"][None, :, None, None], 0.0)
    a = jax.lax.conv_general_dilated(cast(a), cast(w2), (1, 1), "VALID",
                                     dimension_numbers=dn, precision=prec,
                                     preferred_element_type=jnp.float32)
    a = jnp.maximum(a + params["b2"][None, :, None, None], 0.0)
    B = x_nchw.shape[0]
    flat = a.reshape(B, -1)
    L = flat.shape[1]
    pooled = jnp.stack(
        [jnp.max(flat[:, (i * L) // POOL:((i + 1) * L + POOL - 1) // POOL],
                 axis=1) for i in range(POOL)], axis=1)
    return (jnp.dot(cast(pooled), cast(params["wl"]), precision=prec,
                    preferred_element_type=jnp.float32)
            + params["bl"][None, :])


if __name__ == "__main__":
    key = jax.random.PRNGKey(0)
    kx, kp = jax.random.split(key)

    B, C, H, W = 2, 4, 16, 16
    output_dim = 10

    x = jax.random.normal(kx, (B, C, H, W), jnp.float32)
    params = init_params(kp, C, output_dim)

    out = jax.block_until_ready(app4rs_task2_forward(x, params))
    assert out.shape == (B, output_dim)

    # Structural check vs a bf16-operand reference (same arithmetic as the
    # kernel): indexing / flatten-order / tap bugs would give O(0.1+) errors.
    ref_bf16 = reference_forward(x, params, bf16_operands=True)
    np.testing.assert_allclose(np.asarray(out), np.asarray(ref_bf16),
                               rtol=5e-3, atol=5e-3)

    # End-to-end check vs the all-f32 reference; tolerance covers the bf16
    # MXU-operand rounding only.
    ref_f32 = reference_forward(x, params, bf16_operands=False)
    np.testing.assert_allclose(np.asarray(out), np.asarray(ref_f32),
                               rtol=3e-2, atol=3e-2)
    print("KERNEL_OK")
</pallas_src>

<mosaic_0001>
module attributes {stable_mosaic.version = 11 : i64} {
  func.func @_fused_cnn_kernel(%arg0: i32, %arg1: memref<8x512xbf16, #tpu.memory_space<vmem>>, %arg2: memref<16x72xbf16, #tpu.memory_space<vmem>>, %arg3: memref<16x1xf32, #tpu.memory_space<vmem>>, %arg4: memref<3x144xbf16, #tpu.memory_space<vmem>>, %arg5: memref<3x1xf32, #tpu.memory_space<vmem>>, %arg6: memref<1x512xf32, #tpu.memory_space<vmem>>, %arg7: memref<64x128xbf16, #tpu.memory_space<vmem>>, %arg8: memref<1x128xf32, #tpu.memory_space<vmem>>, %arg9: memref<2x128xf32, #tpu.memory_space<vmem>>) attributes {dimension_semantics = [#tpu.dimension_semantics<parallel>], iteration_bounds = array<i64: 1>, scalar_prefetch = 0 : i64, scratch_operands = 0 : i64, tpu.core_type = #tpu.core_type<tc>, window_params = [{transform_indices = @transform_0, window_bounds = array<i64: 8, 512>}, {pipeline_mode = #tpu.pipeline_mode<synchronous>, transform_indices = @transform_1, window_bounds = array<i64: 16, 72>}, {pipeline_mode = #tpu.pipeline_mode<synchronous>, transform_indices = @transform_2, window_bounds = array<i64: 16, 1>}, {pipeline_mode = #tpu.pipeline_mode<synchronous>, transform_indices = @transform_3, window_bounds = array<i64: 3, 144>}, {pipeline_mode = #tpu.pipeline_mode<synchronous>, transform_indices = @transform_4, window_bounds = array<i64: 3, 1>}, {pipeline_mode = #tpu.pipeline_mode<synchronous>, transform_indices = @transform_5, window_bounds = array<i64: 1, 512>}, {pipeline_mode = #tpu.pipeline_mode<synchronous>, transform_indices = @transform_6, window_bounds = array<i64: 64, 128>}, {pipeline_mode = #tpu.pipeline_mode<synchronous>, transform_indices = @transform_7, window_bounds = array<i64: 1, 128>}, {transform_indices = @transform_8, window_bounds = array<i64: 2, 128>}]} {
    %c0 = arith.constant 0 : index
    %c0_0 = arith.constant 0 : index
    %0 = vector.load %arg1[%c0, %c0_0] : memref<8x512xbf16, #tpu.memory_space<vmem>>, vector<8x512xbf16>
    %1 = vector.extract_strided_slice %0 {offsets = [0, 1], sizes = [8, 511], strides = [1, 1]} : vector<8x512xbf16> to vector<8x511xbf16>
    %2 = vector.extract_strided_slice %0 {offsets = [0, 0], sizes = [8, 1], strides = [1, 1]} : vector<8x512xbf16> to vector<8x1xbf16>
    %3 = tpu.concatenate %1, %2 in 1 : vector<8x511xbf16>, vector<8x1xbf16> -> vector<8x512xbf16>
    %4 = vector.extract_strided_slice %0 {offsets = [0, 2], sizes = [8, 510], strides = [1, 1]} : vector<8x512xbf16> to vector<8x510xbf16>
    %5 = vector.extract_strided_slice %0 {offsets = [0, 0], sizes = [8, 2], strides = [1, 1]} : vector<8x512xbf16> to vector<8x2xbf16>
    %6 = tpu.concatenate %4, %5 in 1 : vector<8x510xbf16>, vector<8x2xbf16> -> vector<8x512xbf16>
    %7 = vector.extract_strided_slice %0 {offsets = [0, 16], sizes = [8, 496], strides = [1, 1]} : vector<8x512xbf16> to vector<8x496xbf16>
    %8 = vector.extract_strided_slice %0 {offsets = [0, 0], sizes = [8, 16], strides = [1, 1]} : vector<8x512xbf16> to vector<8x16xbf16>
    %9 = tpu.concatenate %7, %8 in 1 : vector<8x496xbf16>, vector<8x16xbf16> -> vector<8x512xbf16>
    %10 = vector.extract_strided_slice %0 {offsets = [0, 17], sizes = [8, 495], strides = [1, 1]} : vector<8x512xbf16> to vector<8x495xbf16>
    %11 = vector.extract_strided_slice %0 {offsets = [0, 0], sizes = [8, 17], strides = [1, 1]} : vector<8x512xbf16> to vector<8x17xbf16>
    %12 = tpu.concatenate %10, %11 in 1 : vector<8x495xbf16>, vector<8x17xbf16> -> vector<8x512xbf16>
    %13 = vector.extract_strided_slice %0 {offsets = [0, 18], sizes = [8, 494], strides = [1, 1]} : vector<8x512xbf16> to vector<8x494xbf16>
    %14 = vector.extract_strided_slice %0 {offsets = [0, 0], sizes = [8, 18], strides = [1, 1]} : vector<8x512xbf16> to vector<8x18xbf16>
    %15 = tpu.concatenate %13, %14 in 1 : vector<8x494xbf16>, vector<8x18xbf16> -> vector<8x512xbf16>
    %16 = vector.extract_strided_slice %0 {offsets = [0, 32], sizes = [8, 480], strides = [1, 1]} : vector<8x512xbf16> to vector<8x480xbf16>
    %17 = vector.extract_strided_slice %0 {offsets = [0, 0], sizes = [8, 32], strides = [1, 1]} : vector<8x512xbf16> to vector<8x32xbf16>
    %18 = tpu.concatenate %16, %17 in 1 : vector<8x480xbf16>, vector<8x32xbf16> -> vector<8x512xbf16>
    %19 = vector.extract_strided_slice %0 {offsets = [0, 33], sizes = [8, 479], strides = [1, 1]} : vector<8x512xbf16> to vector<8x479xbf16>
    %20 = vector.extract_strided_slice %0 {offsets = [0, 0], sizes = [8, 33], strides = [1, 1]} : vector<8x512xbf16> to vector<8x33xbf16>
    %21 = tpu.concatenate %19, %20 in 1 : vector<8x479xbf16>, vector<8x33xbf16> -> vector<8x512xbf16>
    %22 = vector.extract_strided_slice %0 {offsets = [0, 34], sizes = [8, 478], strides = [1, 1]} : vector<8x512xbf16> to vector<8x478xbf16>
    %23 = vector.extract_strided_slice %0 {offsets = [0, 0], sizes = [8, 34], strides = [1, 1]} : vector<8x512xbf16> to vector<8x34xbf16>
    %24 = tpu.concatenate %22, %23 in 1 : vector<8x478xbf16>, vector<8x34xbf16> -> vector<8x512xbf16>
    %25 = tpu.concatenate %0, %3, %6, %9, %12, %15, %18, %21, %24 in 0 : vector<8x512xbf16>, vector<8x512xbf16>, vector<8x512xbf16>, vector<8x512xbf16>, vector<8x512xbf16>, vector<8x512xbf16>, vector<8x512xbf16>, vector<8x512xbf16>, vector<8x512xbf16> -> vector<72x512xbf16>
    %c0_1 = arith.constant 0 : index
    %c0_2 = arith.constant 0 : index
    %26 = vector.load %arg2[%c0_1, %c0_2] : memref<16x72xbf16, #tpu.memory_space<vmem>>, vector<16x72xbf16>
    %cst = arith.constant dense<0.000000e+00> : vector<16x512xf32>
    %27 = tpu.matmul %26, %25, %cst {dimension_numbers = #tpu.dot_dimension_numbers<[1], [0], [0], [1], [0, 0, 1, 1], [], []>} : vector<16x72xbf16>, vector<72x512xbf16>, vector<16x512xf32> -> vector<16x512xf32>
    %c0_3 = arith.constant 0 : index
    %c0_4 = arith.constant 0 : index
    %28 = vector.load %arg3[%c0_3, %c0_4] : memref<16x1xf32, #tpu.memory_space<vmem>>, vector<16x1xf32>
    %29 = vector.broadcast %28 : vector<16x1xf32> to vector<16x512xf32>
    %30 = arith.addf %27, %29 : vector<16x512xf32>
    %cst_5 = arith.constant 0.000000e+00 : f32
    %31 = vector.broadcast %cst_5 : f32 to vector<16x512xf32>
    %32 = arith.maximumf %30, %31 : vector<16x512xf32>
    %33 = arith.truncf %32 : vector<16x512xf32> to vector<16x512xbf16>
    %34 = vector.extract_strided_slice %33 {offsets = [0, 1], sizes = [16, 511], strides = [1, 1]} : vector<16x512xbf16> to vector<16x511xbf16>
    %35 = vector.extract_strided_slice %33 {offsets = [0, 0], sizes = [16, 1], strides = [1, 1]} : vector<16x512xbf16> to vector<16x1xbf16>
    %36 = tpu.concatenate %34, %35 in 1 : vector<16x511xbf16>, vector<16x1xbf16> -> vector<16x512xbf16>
    %37 = vector.extract_strided_slice %33 {offsets = [0, 2], sizes = [16, 510], strides = [1, 1]} : vector<16x512xbf16> to vector<16x510xbf16>
    %38 = vector.extract_strided_slice %33 {offsets = [0, 0], sizes = [16, 2], strides = [1, 1]} : vector<16x512xbf16> to vector<16x2xbf16>
    %39 = tpu.concatenate %37, %38 in 1 : vector<16x510xbf16>, vector<16x2xbf16> -> vector<16x512xbf16>
    %40 = vector.extract_strided_slice %33 {offsets = [0, 16], sizes = [16, 496], strides = [1, 1]} : vector<16x512xbf16> to vector<16x496xbf16>
    %41 = vector.extract_strided_slice %33 {offsets = [0, 0], sizes = [16, 16], strides = [1, 1]} : vector<16x512xbf16> to vector<16x16xbf16>
    %42 = tpu.concatenate %40, %41 in 1 : vector<16x496xbf16>, vector<16x16xbf16> -> vector<16x512xbf16>
    %43 = vector.extract_strided_slice %33 {offsets = [0, 17], sizes = [16, 495], strides = [1, 1]} : vector<16x512xbf16> to vector<16x495xbf16>
    %44 = vector.extract_strided_slice %33 {offsets = [0, 0], sizes = [16, 17], strides = [1, 1]} : vector<16x512xbf16> to vector<16x17xbf16>
    %45 = tpu.concatenate %43, %44 in 1 : vector<16x495xbf16>, vector<16x17xbf16> -> vector<16x512xbf16>
    %46 = vector.extract_strided_slice %33 {offsets = [0, 18], sizes = [16, 494], strides = [1, 1]} : vector<16x512xbf16> to vector<16x494xbf16>
    %47 = vector.extract_strided_slice %33 {offsets = [0, 0], sizes = [16, 18], strides = [1, 1]} : vector<16x512xbf16> to vector<16x18xbf16>
    %48 = tpu.concatenate %46, %47 in 1 : vector<16x494xbf16>, vector<16x18xbf16> -> vector<16x512xbf16>
    %49 = vector.extract_strided_slice %33 {offsets = [0, 32], sizes = [16, 480], strides = [1, 1]} : vector<16x512xbf16> to vector<16x480xbf16>
    %50 = vector.extract_strided_slice %33 {offsets = [0, 0], sizes = [16, 32], strides = [1, 1]} : vector<16x512xbf16> to vector<16x32xbf16>
    %51 = tpu.concatenate %49, %50 in 1 : vector<16x480xbf16>, vector<16x32xbf16> -> vector<16x512xbf16>
    %52 = vector.extract_strided_slice %33 {offsets = [0, 33], sizes = [16, 479], strides = [1, 1]} : vector<16x512xbf16> to vector<16x479xbf16>
    %53 = vector.extract_strided_slice %33 {offsets = [0, 0], sizes = [16, 33], strides = [1, 1]} : vector<16x512xbf16> to vector<16x33xbf16>
    %54 = tpu.concatenate %52, %53 in 1 : vector<16x479xbf16>, vector<16x33xbf16> -> vector<16x512xbf16>
    %55 = vector.extract_strided_slice %33 {offsets = [0, 34], sizes = [16, 478], strides = [1, 1]} : vector<16x512xbf16> to vector<16x478xbf16>
    %56 = vector.extract_strided_slice %33 {offsets = [0, 0], sizes = [16, 34], strides = [1, 1]} : vector<16x512xbf16> to vector<16x34xbf16>
    %57 = tpu.concatenate %55, %56 in 1 : vector<16x478xbf16>, vector<16x34xbf16> -> vector<16x512xbf16>
    %58 = tpu.concatenate %33, %36, %39, %42, %45, %48, %51, %54, %57 in 0 : vector<16x512xbf16>, vector<16x512xbf16>, vector<16x512xbf16>, vector<16x512xbf16>, vector<16x512xbf16>, vector<16x512xbf16>, vector<16x512xbf16>, vector<16x512xbf16>, vector<16x512xbf16> -> vector<144x512xbf16>
    %c0_6 = arith.constant 0 : index
    %c0_7 = arith.constant 0 : index
    %59 = vector.load %arg4[%c0_6, %c0_7] : memref<3x144xbf16, #tpu.memory_space<vmem>>, vector<3x144xbf16>
    %cst_8 = arith.constant dense<0.000000e+00> : vector<3x512xf32>
    %60 = tpu.matmul %59, %58, %cst_8 {dimension_numbers = #tpu.dot_dimension_numbers<[1], [0], [0], [1], [0, 0, 1, 1], [], []>} : vector<3x144xbf16>, vector<144x512xbf16>, vector<3x512xf32> -> vector<3x512xf32>
    %c0_9 = arith.constant 0 : index
    %c0_10 = arith.constant 0 : index
    %61 = vector.load %arg5[%c0_9, %c0_10] : memref<3x1xf32, #tpu.memory_space<vmem>>, vector<3x1xf32>
    %62 = vector.broadcast %61 : vector<3x1xf32> to vector<3x512xf32>
    %63 = arith.addf %60, %62 : vector<3x512xf32>
    %cst_11 = arith.constant 0.000000e+00 : f32
    %64 = vector.broadcast %cst_11 : f32 to vector<3x512xf32>
    %65 = arith.maximumf %63, %64 : vector<3x512xf32>
    %c0_12 = arith.constant 0 : index
    %c0_13 = arith.constant 0 : index
    %66 = vector.load %arg6[%c0_12, %c0_13] : memref<1x512xf32, #tpu.memory_space<vmem>>, vector<1x512xf32>
    %67 = vector.broadcast %66 : vector<1x512xf32> to vector<3x512xf32>
    %68 = arith.mulf %65, %67 : vector<3x512xf32>
    %69 = vector.extract_strided_slice %68 {offsets = [0, 0], sizes = [1, 256], strides = [1, 1]} : vector<3x512xf32> to vector<1x256xf32>
    %70 = vector.extract_strided_slice %68 {offsets = [0, 256], sizes = [1, 256], strides = [1, 1]} : vector<3x512xf32> to vector<1x256xf32>
    %71 = tpu.concatenate %69, %70 in 0 : vector<1x256xf32>, vector<1x256xf32> -> vector<2x256xf32>
    %72 = vector.extract_strided_slice %68 {offsets = [1, 0], sizes = [1, 256], strides = [1, 1]} : vector<3x512xf32> to vector<1x256xf32>
    %73 = vector.extract_strided_slice %68 {offsets = [1, 256], sizes = [1, 256], strides = [1, 1]} : vector<3x512xf32> to vector<1x256xf32>
    %74 = tpu.concatenate %72, %73 in 0 : vector<1x256xf32>, vector<1x256xf32> -> vector<2x256xf32>
    %75 = vector.extract_strided_slice %68 {offsets = [2, 0], sizes = [1, 256], strides = [1, 1]} : vector<3x512xf32> to vector<1x256xf32>
    %76 = vector.extract_strided_slice %68 {offsets = [2, 256], sizes = [1, 256], strides = [1, 1]} : vector<3x512xf32> to vector<1x256xf32>
    %77 = tpu.concatenate %75, %76 in 0 : vector<1x256xf32>, vector<1x256xf32> -> vector<2x256xf32>
    %78 = vector.extract_strided_slice %71 {offsets = [0, 0], sizes = [2, 7], strides = [1, 1]} : vector<2x256xf32> to vector<2x7xf32>
    %cst_14 = arith.constant dense<0xFF800000> : vector<2xf32>
    %79 = vector.multi_reduction <maximumf>, %78, %cst_14 [1] : vector<2x7xf32> to vector<2xf32>
    %80 = vector.shape_cast %79 : vector<2xf32> to vector<2x1xf32>
    %81 = vector.extract_strided_slice %71 {offsets = [0, 6], sizes = [2, 12], strides = [1, 1]} : vector<2x256xf32> to vector<2x12xf32>
    %cst_15 = arith.constant dense<0xFF800000> : vector<2xf32>
    %82 = vector.multi_reduction <maximumf>, %81, %cst_15 [1] : vector<2x12xf32> to vector<2xf32>
    %83 = vector.shape_cast %82 : vector<2xf32> to vector<2x1xf32>
    %84 = vector.extract_strided_slice %71 {offsets = [0, 17], sizes = [2, 8], strides = [1, 1]} : vector<2x256xf32> to vector<2x8xf32>
    %cst_16 = arith.constant dense<0xFF800000> : vector<2xf32>
    %85 = vector.multi_reduction <maximumf>, %84, %cst_16 [1] : vector<2x8xf32> to vector<2xf32>
    %86 = vector.shape_cast %85 : vector<2xf32> to vector<2x1xf32>
    %87 = vector.extract_strided_slice %71 {offsets = [0, 24], sizes = [2, 11], strides = [1, 1]} : vector<2x256xf32> to vector<2x11xf32>
    %cst_17 = arith.constant dense<0xFF800000> : vector<2xf32>
    %88 = vector.multi_reduction <maximumf>, %87, %cst_17 [1] : vector<2x11xf32> to vector<2xf32>
    %89 = vector.shape_cast %88 : vector<2xf32> to vector<2x1xf32>
    %90 = vector.extract_strided_slice %71 {offsets = [0, 35], sizes = [2, 7], strides = [1, 1]} : vector<2x256xf32> to vector<2x7xf32>
    %cst_18 = arith.constant dense<0xFF800000> : vector<2xf32>
    %91 = vector.multi_reduction <maximumf>, %90, %cst_18 [1] : vector<2x7xf32> to vector<2xf32>
    %92 = vector.shape_cast %91 : vector<2xf32> to vector<2x1xf32>
    %93 = vector.extract_strided_slice %71 {offsets = [0, 41], sizes = [2, 12], strides = [1, 1]} : vector<2x256xf32> to vector<2x12xf32>
    %cst_19 = arith.constant dense<0xFF800000> : vector<2xf32>
    %94 = vector.multi_reduction <maximumf>, %93, %cst_19 [1] : vector<2x12xf32> to vector<2xf32>
    %95 = vector.shape_cast %94 : vector<2xf32> to vector<2x1xf32>
    %96 = vector.extract_strided_slice %71 {offsets = [0, 52], sizes = [2, 8], strides = [1, 1]} : vector<2x256xf32> to vector<2x8xf32>
    %cst_20 = arith.constant dense<0xFF800000> : vector<2xf32>
    %97 = vector.multi_reduction <maximumf>, %96, %cst_20 [1] : vector<2x8xf32> to vector<2xf32>
    %98 = vector.shape_cast %97 : vector<2xf32> to vector<2x1xf32>
    %99 = vector.extract_strided_slice %71 {offsets = [0, 59], sizes = [2, 11], strides = [1, 1]} : vector<2x256xf32> to vector<2x11xf32>
    %cst_21 = arith.constant dense<0xFF800000> : vector<2xf32>
    %100 = vector.multi_reduction <maximumf>, %99, %cst_21 [1] : vector<2x11xf32> to vector<2xf32>
    %101 = vector.shape_cast %100 : vector<2xf32> to vector<2x1xf32>
    %102 = vector.extract_strided_slice %71 {offsets = [0, 70], sizes = [2, 11], strides = [1, 1]} : vector<2x256xf32> to vector<2x11xf32>
    %cst_22 = arith.constant dense<0xFF800000> : vector<2xf32>
    %103 = vector.multi_reduction <maximumf>, %102, %cst_22 [1] : vector<2x11xf32> to vector<2xf32>
    %104 = vector.shape_cast %103 : vector<2xf32> to vector<2x1xf32>
    %105 = vector.extract_strided_slice %71 {offsets = [0, 80], sizes = [2, 8], strides = [1, 1]} : vector<2x256xf32> to vector<2x8xf32>
    %cst_23 = arith.constant dense<0xFF800000> : vector<2xf32>
    %106 = vector.multi_reduction <maximumf>, %105, %cst_23 [1] : vector<2x8xf32> to vector<2xf32>
    %107 = vector.shape_cast %106 : vector<2xf32> to vector<2x1xf32>
    %108 = vector.extract_strided_slice %71 {offsets = [0, 87], sizes = [2, 12], strides = [1, 1]} : vector<2x256xf32> to vector<2x12xf32>
    %cst_24 = arith.constant dense<0xFF800000> : vector<2xf32>
    %109 = vector.multi_reduction <maximumf>, %108, %cst_24 [1] : vector<2x12xf32> to vector<2xf32>
    %110 = vector.shape_cast %109 : vector<2xf32> to vector<2x1xf32>
    %111 = vector.extract_strided_slice %71 {offsets = [0, 98], sizes = [2, 7], strides = [1, 1]} : vector<2x256xf32> to vector<2x7xf32>
    %cst_25 = arith.constant dense<0xFF800000> : vector<2xf32>
    %112 = vector.multi_reduction <maximumf>, %111, %cst_25 [1] : vector<2x7xf32> to vector<2xf32>
    %113 = vector.shape_cast %112 : vector<2xf32> to vector<2x1xf32>
    %114 = vector.extract_strided_slice %71 {offsets = [0, 105], sizes = [2, 11], strides = [1, 1]} : vector<2x256xf32> to vector<2x11xf32>
    %cst_26 = arith.constant dense<0xFF800000> : vector<2xf32>
    %115 = vector.multi_reduction <maximumf>, %114, %cst_26 [1] : vector<2x11xf32> to vector<2xf32>
    %116 = vector.shape_cast %115 : vector<2xf32> to vector<2x1xf32>
    %117 = vector.extract_strided_slice %71 {offsets = [0, 115], sizes = [2, 8], strides = [1, 1]} : vector<2x256xf32> to vector<2x8xf32>
    %cst_27 = arith.constant dense<0xFF800000> : vector<2xf32>
    %118 = vector.multi_reduction <maximumf>, %117, %cst_27 [1] : vector<2x8xf32> to vector<2xf32>
    %119 = vector.shape_cast %118 : vector<2xf32> to vector<2x1xf32>
    %120 = vector.extract_strided_slice %71 {offsets = [0, 122], sizes = [2, 12], strides = [1, 1]} : vector<2x256xf32> to vector<2x12xf32>
    %cst_28 = arith.constant dense<0xFF800000> : vector<2xf32>
    %121 = vector.multi_reduction <maximumf>, %120, %cst_28 [1] : vector<2x12xf32> to vector<2xf32>
    %122 = vector.shape_cast %121 : vector<2xf32> to vector<2x1xf32>
    %123 = vector.extract_strided_slice %71 {offsets = [0, 133], sizes = [2, 7], strides = [1, 1]} : vector<2x256xf32> to vector<2x7xf32>
    %cst_29 = arith.constant dense<0xFF800000> : vector<2xf32>
    %124 = vector.multi_reduction <maximumf>, %123, %cst_29 [1] : vector<2x7xf32> to vector<2xf32>
    %125 = vector.shape_cast %124 : vector<2xf32> to vector<2x1xf32>
    %126 = vector.extract_strided_slice %71 {offsets = [0, 144], sizes = [2, 7], strides = [1, 1]} : vector<2x256xf32> to vector<2x7xf32>
    %cst_30 = arith.constant dense<0xFF800000> : vector<2xf32>
    %127 = vector.multi_reduction <maximumf>, %126, %cst_30 [1] : vector<2x7xf32> to vector<2xf32>
    %128 = vector.shape_cast %127 : vector<2xf32> to vector<2x1xf32>
    %129 = vector.extract_strided_slice %71 {offsets = [0, 150], sizes = [2, 12], strides = [1, 1]} : vector<2x256xf32> to vector<2x12xf32>
    %cst_31 = arith.constant dense<0xFF800000> : vector<2xf32>
    %130 = vector.multi_reduction <maximumf>, %129, %cst_31 [1] : vector<2x12xf32> to vector<2xf32>
    %131 = vector.shape_cast %130 : vector<2xf32> to vector<2x1xf32>
    %132 = vector.extract_strided_slice %71 {offsets = [0, 161], sizes = [2, 8], strides = [1, 1]} : vector<2x256xf32> to vector<2x8xf32>
    %cst_32 = arith.constant dense<0xFF800000> : vector<2xf32>
    %133 = vector.multi_reduction <maximumf>, %132, %cst_32 [1] : vector<2x8xf32> to vector<2xf32>
    %134 = vector.shape_cast %133 : vector<2xf32> to vector<2x1xf32>
    %135 = vector.extract_strided_slice %71 {offsets = [0, 168], sizes = [2, 11], strides = [1, 1]} : vector<2x256xf32> to vector<2x11xf32>
    %cst_33 = arith.constant dense<0xFF800000> : vector<2xf32>
    %136 = vector.multi_reduction <maximumf>, %135, %cst_33 [1] : vector<2x11xf32> to vector<2xf32>
    %137 = vector.shape_cast %136 : vector<2xf32> to vector<2x1xf32>
    %138 = vector.extract_strided_slice %71 {offsets = [0, 179], sizes = [2, 7], strides = [1, 1]} : vector<2x256xf32> to vector<2x7xf32>
    %cst_34 = arith.constant dense<0xFF800000> : vector<2xf32>
    %139 = vector.multi_reduction <maximumf>, %138, %cst_34 [1] : vector<2x7xf32> to vector<2xf32>
    %140 = vector.shape_cast %139 : vector<2xf32> to vector<2x1xf32>
    %141 = vector.extract_strided_slice %71 {offsets = [0, 185], sizes = [2, 3], strides = [1, 1]} : vector<2x256xf32> to vector<2x3xf32>
    %cst_35 = arith.constant dense<0xFF800000> : vector<2xf32>
    %142 = vector.multi_reduction <maximumf>, %141, %cst_35 [1] : vector<2x3xf32> to vector<2xf32>
    %143 = vector.shape_cast %142 : vector<2xf32> to vector<2x1xf32>
    %144 = vector.extract_strided_slice %74 {offsets = [0, 0], sizes = [2, 5], strides = [1, 1]} : vector<2x256xf32> to vector<2x5xf32>
    %cst_36 = arith.constant dense<0xFF800000> : vector<2xf32>
    %145 = vector.multi_reduction <maximumf>, %144, %cst_36 [1] : vector<2x5xf32> to vector<2xf32>
    %146 = vector.shape_cast %145 : vector<2xf32> to vector<2x1xf32>
    %147 = arith.maximumf %143, %146 : vector<2x1xf32>
    %148 = vector.extract_strided_slice %74 {offsets = [0, 4], sizes = [2, 8], strides = [1, 1]} : vector<2x256xf32> to vector<2x8xf32>
    %cst_37 = arith.constant dense<0xFF800000> : vector<2xf32>
    %149 = vector.multi_reduction <maximumf>, %148, %cst_37 [1] : vector<2x8xf32> to vector<2xf32>
    %150 = vector.shape_cast %149 : vector<2xf32> to vector<2x1xf32>
    %151 = vector.extract_strided_slice %74 {offsets = [0, 11], sizes = [2, 11], strides = [1, 1]} : vector<2x256xf32> to vector<2x11xf32>
    %cst_38 = arith.constant dense<0xFF800000> : vector<2xf32>
    %152 = vector.multi_reduction <maximumf>, %151, %cst_38 [1] : vector<2x11xf32> to vector<2xf32>
    %153 = vector.shape_cast %152 : vector<2xf32> to vector<2x1xf32>
    %154 = vector.extract_strided_slice %74 {offsets = [0, 22], sizes = [2, 11], strides = [1, 1]} : vector<2x256xf32> to vector<2x11xf32>
    %cst_39 = arith.constant dense<0xFF800000> : vector<2xf32>
    %155 = vector.multi_reduction <maximumf>, %154, %cst_39 [1] : vector<2x11xf32> to vector<2xf32>
    %156 = vector.shape_cast %155 : vector<2xf32> to vector<2x1xf32>
    %157 = vector.extract_strided_slice %74 {offsets = [0, 32], sizes = [2, 8], strides = [1, 1]} : vector<2x256xf32> to vector<2x8xf32>
    %cst_40 = arith.constant dense<0xFF800000> : vector<2xf32>
    %158 = vector.multi_reduction <maximumf>, %157, %cst_40 [1] : vector<2x8xf32> to vector<2xf32>
    %159 = vector.shape_cast %158 : vector<2xf32> to vector<2x1xf32>
    %160 = vector.extract_strided_slice %74 {offsets = [0, 39], sizes = [2, 12], strides = [1, 1]} : vector<2x256xf32> to vector<2x12xf32>
    %cst_41 = arith.constant dense<0xFF800000> : vector<2xf32>
    %161 = vector.multi_reduction <maximumf>, %160, %cst_41 [1] : vector<2x12xf32> to vector<2xf32>
    %162 = vector.shape_cast %161 : vector<2xf32> to vector<2x1xf32>
    %163 = vector.extract_strided_slice %74 {offsets = [0, 50], sizes = [2, 7], strides = [1, 1]} : vector<2x256xf32> to vector<2x7xf32>
    %cst_42 = arith.constant dense<0xFF800000> : vector<2xf32>
    %164 = vector.multi_reduction <maximumf>, %163, %cst_42 [1] : vector<2x7xf32> to vector<2xf32>
    %165 = vector.shape_cast %164 : vector<2xf32> to vector<2x1xf32>
    %166 = vector.extract_strided_slice %74 {offsets = [0, 57], sizes = [2, 11], strides = [1, 1]} : vector<2x256xf32> to vector<2x11xf32>
    %cst_43 = arith.constant dense<0xFF800000> : vector<2xf32>
    %167 = vector.multi_reduction <maximumf>, %166, %cst_43 [1] : vector<2x11xf32> to vector<2xf32>
    %168 = vector.shape_cast %167 : vector<2xf32> to vector<2x1xf32>
    %169 = vector.extract_strided_slice %74 {offsets = [0, 67], sizes = [2, 8], strides = [1, 1]} : vector<2x256xf32> to vector<2x8xf32>
    %cst_44 = arith.constant dense<0xFF800000> : vector<2xf32>
    %170 = vector.multi_reduction <maximumf>, %169, %cst_44 [1] : vector<2x8xf32> to vector<2xf32>
    %171 = vector.shape_cast %170 : vector<2xf32> to vector<2x1xf32>
    %172 = vector.extract_strided_slice %74 {offsets = [0, 74], sizes = [2, 12], strides = [1, 1]} : vector<2x256xf32> to vector<2x12xf32>
    %cst_45 = arith.constant dense<0xFF800000> : vector<2xf32>
    %173 = vector.multi_reduction <maximumf>, %172, %cst_45 [1] : vector<2x12xf32> to vector<2xf32>
    %174 = vector.shape_cast %173 : vector<2xf32> to vector<2x1xf32>
    %175 = vector.extract_strided_slice %74 {offsets = [0, 85], sizes = [2, 7], strides = [1, 1]} : vector<2x256xf32> to vector<2x7xf32>
    %cst_46 = arith.constant dense<0xFF800000> : vector<2xf32>
    %176 = vector.multi_reduction <maximumf>, %175, %cst_46 [1] : vector<2x7xf32> to vector<2xf32>
    %177 = vector.shape_cast %176 : vector<2xf32> to vector<2x1xf32>
    %178 = vector.extract_strided_slice %74 {offsets = [0, 96], sizes = [2, 7], strides = [1, 1]} : vector<2x256xf32> to vector<2x7xf32>
    %cst_47 = arith.constant dense<0xFF800000> : vector<2xf32>
    %179 = vector.multi_reduction <maximumf>, %178, %cst_47 [1] : vector<2x7xf32> to vector<2xf32>
    %180 = vector.shape_cast %179 : vector<2xf32> to vector<2x1xf32>
    %181 = vector.extract_strided_slice %74 {offsets = [0, 102], sizes = [2, 12], strides = [1, 1]} : vector<2x256xf32> to vector<2x12xf32>
    %cst_48 = arith.constant dense<0xFF800000> : vector<2xf32>
    %182 = vector.multi_reduction <maximumf>, %181, %cst_48 [1] : vector<2x12xf32> to vector<2xf32>
    %183 = vector.shape_cast %182 : vector<2xf32> to vector<2x1xf32>
    %184 = vector.extract_strided_slice %74 {offsets = [0, 113], sizes = [2, 8], strides = [1, 1]} : vector<2x256xf32> to vector<2x8xf32>
    %cst_49 = arith.constant dense<0xFF800000> : vector<2xf32>
    %185 = vector.multi_reduction <maximumf>, %184, %cst_49 [1] : vector<2x8xf32> to vector<2xf32>
    %186 = vector.shape_cast %185 : vector<2xf32> to vector<2x1xf32>
    %187 = vector.extract_strided_slice %74 {offsets = [0, 120], sizes = [2, 11], strides = [1, 1]} : vector<2x256xf32> to vector<2x11xf32>
    %cst_50 = arith.constant dense<0xFF800000> : vector<2xf32>
    %188 = vector.multi_reduction <maximumf>, %187, %cst_50 [1] : vector<2x11xf32> to vector<2xf32>
    %189 = vector.shape_cast %188 : vector<2xf32> to vector<2x1xf32>
    %190 = vector.extract_strided_slice %74 {offsets = [0, 131], sizes = [2, 7], strides = [1, 1]} : vector<2x256xf32> to vector<2x7xf32>
    %cst_51 = arith.constant dense<0xFF800000> : vector<2xf32>
    %191 = vector.multi_reduction <maximumf>, %190, %cst_51 [1] : vector<2x7xf32> to vector<2xf32>
    %192 = vector.shape_cast %191 : vector<2xf32> to vector<2x1xf32>
    %193 = vector.extract_strided_slice %74 {offsets = [0, 137], sizes = [2, 12], strides = [1, 1]} : vector<2x256xf32> to vector<2x12xf32>
    %cst_52 = arith.constant dense<0xFF800000> : vector<2xf32>
    %194 = vector.multi_reduction <maximumf>, %193, %cst_52 [1] : vector<2x12xf32> to vector<2xf32>
    %195 = vector.shape_cast %194 : vector<2xf32> to vector<2x1xf32>
    %196 = vector.extract_strided_slice %74 {offsets = [0, 148], sizes = [2, 8], strides = [1, 1]} : vector<2x256xf32> to vector<2x8xf32>
    %cst_53 = arith.constant dense<0xFF800000> : vector<2xf32>
    %197 = vector.multi_reduction <maximumf>, %196, %cst_53 [1] : vector<2x8xf32> to vector<2xf32>
    %198 = vector.shape_cast %197 : vector<2xf32> to vector<2x1xf32>
    %199 = vector.extract_strided_slice %74 {offsets = [0, 155], sizes = [2, 11], strides = [1, 1]} : vector<2x256xf32> to vector<2x11xf32>
    %cst_54 = arith.constant dense<0xFF800000> : vector<2xf32>
    %200 = vector.multi_reduction <maximumf>, %199, %cst_54 [1] : vector<2x11xf32> to vector<2xf32>
    %201 = vector.shape_cast %200 : vector<2xf32> to vector<2x1xf32>
    %202 = vector.extract_strided_slice %74 {offsets = [0, 166], sizes = [2, 11], strides = [1, 1]} : vector<2x256xf32> to vector<2x11xf32>
    %cst_55 = arith.constant dense<0xFF800000> : vector<2xf32>
    %203 = vector.multi_reduction <maximumf>, %202, %cst_55 [1] : vector<2x11xf32> to vector<2xf32>
    %204 = vector.shape_cast %203 : vector<2xf32> to vector<2x1xf32>
    %205 = vector.extract_strided_slice %74 {offsets = [0, 176], sizes = [2, 8], strides = [1, 1]} : vector<2x256xf32> to vector<2x8xf32>
    %cst_56 = arith.constant dense<0xFF800000> : vector<2xf32>
    %206 = vector.multi_reduction <maximumf>, %205, %cst_56 [1] : vector<2x8xf32> to vector<2xf32>
    %207 = vector.shape_cast %206 : vector<2xf32> to vector<2x1xf32>
    %208 = vector.extract_strided_slice %74 {offsets = [0, 183], sizes = [2, 5], strides = [1, 1]} : vector<2x256xf32> to vector<2x5xf32>
    %cst_57 = arith.constant dense<0xFF800000> : vector<2xf32>
    %209 = vector.multi_reduction <maximumf>, %208, %cst_57 [1] : vector<2x5xf32> to vector<2xf32>
    %210 = vector.shape_cast %209 : vector<2xf32> to vector<2x1xf32>
    %211 = vector.extract_strided_slice %77 {offsets = [0, 0], sizes = [2, 3], strides = [1, 1]} : vector<2x256xf32> to vector<2x3xf32>
    %cst_58 = arith.constant dense<0xFF800000> : vector<2xf32>
    %212 = vector.multi_reduction <maximumf>, %211, %cst_58 [1] : vector<2x3xf32> to vector<2xf32>
    %213 = vector.shape_cast %212 : vector<2xf32> to vector<2x1xf32>
    %214 = arith.maximumf %210, %213 : vector<2x1xf32>
    %215 = vector.extract_strided_slice %77 {offsets = [0, 2], sizes = [2, 7], strides = [1, 1]} : vector<2x256xf32> to vector<2x7xf32>
    %cst_59 = arith.constant dense<0xFF800000> : vector<2xf32>
    %216 = vector.multi_reduction <maximumf>, %215, %cst_59 [1] : vector<2x7xf32> to vector<2xf32>
    %217 = vector.shape_cast %216 : vector<2xf32> to vector<2x1xf32>
    %218 = vector.extract_strided_slice %77 {offsets = [0, 9], sizes = [2, 11], strides = [1, 1]} : vector<2x256xf32> to vector<2x11xf32>
    %cst_60 = arith.constant dense<0xFF800000> : vector<2xf32>
    %219 = vector.multi_reduction <maximumf>, %218, %cst_60 [1] : vector<2x11xf32> to vector<2xf32>
    %220 = vector.shape_cast %219 : vector<2xf32> to vector<2x1xf32>
    %221 = vector.extract_strided_slice %77 {offsets = [0, 19], sizes = [2, 8], strides = [1, 1]} : vector<2x256xf32> to vector<2x8xf32>
    %cst_61 = arith.constant dense<0xFF800000> : vector<2xf32>
    %222 = vector.multi_reduction <maximumf>, %221, %cst_61 [1] : vector<2x8xf32> to vector<2xf32>
    %223 = vector.shape_cast %222 : vector<2xf32> to vector<2x1xf32>
    %224 = vector.extract_strided_slice %77 {offsets = [0, 26], sizes = [2, 12], strides = [1, 1]} : vector<2x256xf32> to vector<2x12xf32>
    %cst_62 = arith.constant dense<0xFF800000> : vector<2xf32>
    %225 = vector.multi_reduction <maximumf>, %224, %cst_62 [1] : vector<2x12xf32> to vector<2xf32>
    %226 = vector.shape_cast %225 : vector<2xf32> to vector<2x1xf32>
    %227 = vector.extract_strided_slice %77 {offsets = [0, 37], sizes = [2, 7], strides = [1, 1]} : vector<2x256xf32> to vector<2x7xf32>
    %cst_63 = arith.constant dense<0xFF800000> : vector<2xf32>
    %228 = vector.multi_reduction <maximumf>, %227, %cst_63 [1] : vector<2x7xf32> to vector<2xf32>
    %229 = vector.shape_cast %228 : vector<2xf32> to vector<2x1xf32>
    %230 = vector.extract_strided_slice %77 {offsets = [0, 48], sizes = [2, 7], strides = [1, 1]} : vector<2x256xf32> to vector<2x7xf32>
    %cst_64 = arith.constant dense<0xFF800000> : vector<2xf32>
    %231 = vector.multi_reduction <maximumf>, %230, %cst_64 [1] : vector<2x7xf32> to vector<2xf32>
    %232 = vector.shape_cast %231 : vector<2xf32> to vector<2x1xf32>
    %233 = vector.extract_strided_slice %77 {offsets = [0, 54], sizes = [2, 12], strides = [1, 1]} : vector<2x256xf32> to vector<2x12xf32>
    %cst_65 = arith.constant dense<0xFF800000> : vector<2xf32>
    %234 = vector.multi_reduction <maximumf>, %233, %cst_65 [1] : vector<2x12xf32> to vector<2xf32>
    %235 = vector.shape_cast %234 : vector<2xf32> to vector<2x1xf32>
    %236 = vector.extract_strided_slice %77 {offsets = [0, 65], sizes = [2, 8], strides = [1, 1]} : vector<2x256xf32> to vector<2x8xf32>
    %cst_66 = arith.constant dense<0xFF800000> : vector<2xf32>
    %237 = vector.multi_reduction <maximumf>, %236, %cst_66 [1] : vector<2x8xf32> to vector<2xf32>
    %238 = vector.shape_cast %237 : vector<2xf32> to vector<2x1xf32>
    %239 = vector.extract_strided_slice %77 {offsets = [0, 72], sizes = [2, 11], strides = [1, 1]} : vector<2x256xf32> to vector<2x11xf32>
    %cst_67 = arith.constant dense<0xFF800000> : vector<2xf32>
    %240 = vector.multi_reduction <maximumf>, %239, %cst_67 [1] : vector<2x11xf32> to vector<2xf32>
    %241 = vector.shape_cast %240 : vector<2xf32> to vector<2x1xf32>
    %242 = vector.extract_strided_slice %77 {offsets = [0, 83], sizes = [2, 7], strides = [1, 1]} : vector<2x256xf32> to vector<2x7xf32>
    %cst_68 = arith.constant dense<0xFF800000> : vector<2xf32>
    %243 = vector.multi_reduction <maximumf>, %242, %cst_68 [1] : vector<2x7xf32> to vector<2xf32>
    %244 = vector.shape_cast %243 : vector<2xf32> to vector<2x1xf32>
    %245 = vector.extract_strided_slice %77 {offsets = [0, 89], sizes = [2, 12], strides = [1, 1]} : vector<2x256xf32> to vector<2x12xf32>
    %cst_69 = arith.constant dense<0xFF800000> : vector<2xf32>
    %246 = vector.multi_reduction <maximumf>, %245, %cst_69 [1] : vector<2x12xf32> to vector<2xf32>
    %247 = vector.shape_cast %246 : vector<2xf32> to vector<2x1xf32>
    %248 = vector.extract_strided_slice %77 {offsets = [0, 100], sizes = [2, 8], strides = [1, 1]} : vector<2x256xf32> to vector<2x8xf32>
    %cst_70 = arith.constant dense<0xFF800000> : vector<2xf32>
    %249 = vector.multi_reduction <maximumf>, %248, %cst_70 [1] : vector<2x8xf32> to vector<2xf32>
    %250 = vector.shape_cast %249 : vector<2xf32> to vector<2x1xf32>
    %251 = vector.extract_strided_slice %77 {offsets = [0, 107], sizes = [2, 11], strides = [1, 1]} : vector<2x256xf32> to vector<2x11xf32>
    %cst_71 = arith.constant dense<0xFF800000> : vector<2xf32>
    %252 = vector.multi_reduction <maximumf>, %251, %cst_71 [1] : vector<2x11xf32> to vector<2xf32>
    %253 = vector.shape_cast %252 : vector<2xf32> to vector<2x1xf32>
    %254 = vector.extract_strided_slice %77 {offsets = [0, 118], sizes = [2, 11], strides = [1, 1]} : vector<2x256xf32> to vector<2x11xf32>
    %cst_72 = arith.constant dense<0xFF800000> : vector<2xf32>
    %255 = vector.multi_reduction <maximumf>, %254, %cst_72 [1] : vector<2x11xf32> to vector<2xf32>
    %256 = vector.shape_cast %255 : vector<2xf32> to vector<2x1xf32>
    %257 = vector.extract_strided_slice %77 {offsets = [0, 128], sizes = [2, 8], strides = [1, 1]} : vector<2x256xf32> to vector<2x8xf32>
    %cst_73 = arith.constant dense<0xFF800000> : vector<2xf32>
    %258 = vector.multi_reduction <maximumf>, %257, %cst_73 [1] : vector<2x8xf32> to vector<2xf32>
    %259 = vector.shape_cast %258 : vector<2xf32> to vector<2x1xf32>
    %260 = vector.extract_strided_slice %77 {offsets = [0, 135], sizes = [2, 12], strides = [1, 1]} : vector<2x256xf32> to vector<2x12xf32>
    %cst_74 = arith.constant dense<0xFF800000> : vector<2xf32>
    %261 = vector.multi_reduction <maximumf>, %260, %cst_74 [1] : vector<2x12xf32> to vector<2xf32>
    %262 = vector.shape_cast %261 : vector<2xf32> to vector<2x1xf32>
    %263 = vector.extract_strided_slice %77 {offsets = [0, 146], sizes = [2, 7], strides = [1, 1]} : vector<2x256xf32> to vector<2x7xf32>
    %cst_75 = arith.constant dense<0xFF800000> : vector<2xf32>
    %264 = vector.multi_reduction <maximumf>, %263, %cst_75 [1] : vector<2x7xf32> to vector<2xf32>
    %265 = vector.shape_cast %264 : vector<2xf32> to vector<2x1xf32>
    %266 = vector.extract_strided_slice %77 {offsets = [0, 153], sizes = [2, 11], strides = [1, 1]} : vector<2x256xf32> to vector<2x11xf32>
    %cst_76 = arith.constant dense<0xFF800000> : vector<2xf32>
    %267 = vector.multi_reduction <maximumf>, %266, %cst_76 [1] : vector<2x11xf32> to vector<2xf32>
    %268 = vector.shape_cast %267 : vector<2xf32> to vector<2x1xf32>
    %269 = vector.extract_strided_slice %77 {offsets = [0, 163], sizes = [2, 8], strides = [1, 1]} : vector<2x256xf32> to vector<2x8xf32>
    %cst_77 = arith.constant dense<0xFF800000> : vector<2xf32>
    %270 = vector.multi_reduction <maximumf>, %269, %cst_77 [1] : vector<2x8xf32> to vector<2xf32>
    %271 = vector.shape_cast %270 : vector<2xf32> to vector<2x1xf32>
    %272 = vector.extract_strided_slice %77 {offsets = [0, 170], sizes = [2, 12], strides = [1, 1]} : vector<2x256xf32> to vector<2x12xf32>
    %cst_78 = arith.constant dense<0xFF800000> : vector<2xf32>
    %273 = vector.multi_reduction <maximumf>, %272, %cst_78 [1] : vector<2x12xf32> to vector<2xf32>
    %274 = vector.shape_cast %273 : vector<2xf32> to vector<2x1xf32>
    %275 = vector.extract_strided_slice %77 {offsets = [0, 181], sizes = [2, 7], strides = [1, 1]} : vector<2x256xf32> to vector<2x7xf32>
    %cst_79 = arith.constant dense<0xFF800000> : vector<2xf32>
    %276 = vector.multi_reduction <maximumf>, %275, %cst_79 [1] : vector<2x7xf32> to vector<2xf32>
    %277 = vector.shape_cast %276 : vector<2xf32> to vector<2x1xf32>
    %278 = tpu.concatenate %80, %83, %86, %89, %92, %95, %98, %101, %104, %107, %110, %113, %116, %119, %122, %125 in 1 : vector<2x1xf32>, vector<2x1xf32>, vector<2x1xf32>, vector<2x1xf32>, vector<2x1xf32>, vector<2x1xf32>, vector<2x1xf32>, vector<2x1xf32>, vector<2x1xf32>, vector<2x1xf32>, vector<2x1xf32>, vector<2x1xf32>, vector<2x1xf32>, vector<2x1xf32>, vector<2x1xf32>, vector<2x1xf32> -> vector<2x16xf32>
    %279 = tpu.concatenate %128, %131, %134, %137, %140, %147, %150, %153, %156, %159, %162, %165, %168, %171, %174, %177 in 1 : vector<2x1xf32>, vector<2x1xf32>, vector<2x1xf32>, vector<2x1xf32>, vector<2x1xf32>, vector<2x1xf32>, vector<2x1xf32>, vector<2x1xf32>, vector<2x1xf32>, vector<2x1xf32>, vector<2x1xf32>, vector<2x1xf32>, vector<2x1xf32>, vector<2x1xf32>, vector<2x1xf32>, vector<2x1xf32> -> vector<2x16xf32>
    %280 = tpu.concatenate %180, %183, %186, %189, %192, %195, %198, %201, %204, %207, %214, %217, %220, %223, %226, %229 in 1 : vector<2x1xf32>, vector<2x1xf32>, vector<2x1xf32>, vector<2x1xf32>, vector<2x1xf32>, vector<2x1xf32>, vector<2x1xf32>, vector<2x1xf32>, vector<2x1xf32>, vector<2x1xf32>, vector<2x1xf32>, vector<2x1xf32>, vector<2x1xf32>, vector<2x1xf32>, vector<2x1xf32>, vector<2x1xf32> -> vector<2x16xf32>
    %281 = tpu.concatenate %232, %235, %238, %241, %244, %247, %250, %253, %256, %259, %262, %265, %268, %271, %274, %277 in 1 : vector<2x1xf32>, vector<2x1xf32>, vector<2x1xf32>, vector<2x1xf32>, vector<2x1xf32>, vector<2x1xf32>, vector<2x1xf32>, vector<2x1xf32>, vector<2x1xf32>, vector<2x1xf32>, vector<2x1xf32>, vector<2x1xf32>, vector<2x1xf32>, vector<2x1xf32>, vector<2x1xf32>, vector<2x1xf32> -> vector<2x16xf32>
    %282 = tpu.concatenate %278, %279, %280, %281 in 1 : vector<2x16xf32>, vector<2x16xf32>, vector<2x16xf32>, vector<2x16xf32> -> vector<2x64xf32>
    %283 = arith.truncf %282 : vector<2x64xf32> to vector<2x64xbf16>
    %c0_80 = arith.constant 0 : index
    %c0_81 = arith.constant 0 : index
    %284 = vector.load %arg7[%c0_80, %c0_81] : memref<64x128xbf16, #tpu.memory_space<vmem>>, vector<64x128xbf16>
    %cst_82 = arith.constant dense<0.000000e+00> : vector<2x128xf32>
    %285 = tpu.matmul %283, %284, %cst_82 {dimension_numbers = #tpu.dot_dimension_numbers<[1], [0], [0], [1], [0, 0, 1, 1], [], []>} : vector<2x64xbf16>, vector<64x128xbf16>, vector<2x128xf32> -> vector<2x128xf32>
    %c0_83 = arith.constant 0 : index
    %c0_84 = arith.constant 0 : index
    %286 = vector.load %arg8[%c0_83, %c0_84] : memref<1x128xf32, #tpu.memory_space<vmem>>, vector<1x128xf32>
    %287 = vector.broadcast %286 : vector<1x128xf32> to vector<2x128xf32>
    %288 = arith.addf %285, %287 : vector<2x128xf32>
    %c0_85 = arith.constant 0 : index
    %c0_86 = arith.constant 0 : index
    %289 = vector.load %arg9[%c0_85, %c0_86] : memref<2x128xf32, #tpu.memory_space<vmem>>, vector<2x128xf32>
    tpu.vector_store %arg9[%c0_85, %c0_86], %288 {strides = array<i32>} : memref<2x128xf32, #tpu.memory_space<vmem>>, vector<2x128xf32>,
    return
  }
  func.func @transform_0(%arg0: i32) -> (i32, i32) {
    %c0_i32 = arith.constant 0 : i32
    %c0_i32_0 = arith.constant 0 : i32
    return %c0_i32, %arg0 : i32, i32
  }
  func.func @transform_1(%arg0: i32) -> (i32, i32) {
    %c0_i32 = arith.constant 0 : i32
    %c0_i32_0 = arith.constant 0 : i32
    %c0_i32_1 = arith.constant 0 : i32
    return %c0_i32, %c0_i32_0 : i32, i32
  }
  func.func @transform_2(%arg0: i32) -> (i32, i32) {
    %c0_i32 = arith.constant 0 : i32
    %c0_i32_0 = arith.constant 0 : i32
    %c0_i32_1 = arith.constant 0 : i32
    return %c0_i32, %c0_i32_0 : i32, i32
  }
  func.func @transform_3(%arg0: i32) -> (i32, i32) {
    %c0_i32 = arith.constant 0 : i32
    %c0_i32_0 = arith.constant 0 : i32
    %c0_i32_1 = arith.constant 0 : i32
    return %c0_i32, %c0_i32_0 : i32, i32
  }
  func.func @transform_4(%arg0: i32) -> (i32, i32) {
    %c0_i32 = arith.constant 0 : i32
    %c0_i32_0 = arith.constant 0 : i32
    %c0_i32_1 = arith.constant 0 : i32
    return %c0_i32, %c0_i32_0 : i32, i32
  }
  func.func @transform_5(%arg0: i32) -> (i32, i32) {
    %c0_i32 = arith.constant 0 : i32
    %c0_i32_0 = arith.constant 0 : i32
    %c0_i32_1 = arith.constant 0 : i32
    return %c0_i32, %c0_i32_0 : i32, i32
  }
  func.func @transform_6(%arg0: i32) -> (i32, i32) {
    %c0_i32 = arith.constant 0 : i32
    %c0_i32_0 = arith.constant 0 : i32
    %c0_i32_1 = arith.constant 0 : i32
    return %c0_i32, %c0_i32_0 : i32, i32
  }
  func.func @transform_7(%arg0: i32) -> (i32, i32) {
    %c0_i32 = arith.constant 0 : i32
    %c0_i32_0 = arith.constant 0 : i32
    %c0_i32_1 = arith.constant 0 : i32
    return %c0_i32, %c0_i32_0 : i32, i32
  }
  func.func @transform_8(%arg0: i32) -> (i32, i32) {
    %c0_i32 = arith.constant 0 : i32
    %c0_i32_0 = arith.constant 0 : i32
    return %arg0, %c0_i32 : i32, i32
  }
}

</mosaic_0001>

<llo_original>
// kernel: tpu_custom_call.1
$region0: #{tpu_custom_call.1}
  #allocation0 [shape = 'u32[]', space=smem, size = 0x4, offset = 0x4, fixed_abs, tag = 'smem constant byte address 0x4 - core index']
  #allocation1 [shape = 'u32[72,128]{1,0:T(1,128)}', space=vmem, size = 0x9000, scoped, tag = 'internal scratch']
  %s0 = inlined_call_operand.vmem [shape: bf16[8,512], index: 0, kind: input, shape index: {}]
  %s1 = inlined_call_operand.hbm [shape: bf16[16,72], index: 1, kind: input, shape index: {}]
  %s2 = inlined_call_operand.vmem [shape: f32[16,1], index: 2, kind: input, shape index: {}]
  %s3 = inlined_call_operand.vmem [shape: bf16[3,144], index: 3, kind: input, shape index: {}]
  %s4 = inlined_call_operand.vmem [shape: f32[3,1], index: 4, kind: input, shape index: {}]
  %s5 = inlined_call_operand.hbm [shape: f32[1,512], index: 5, kind: input, shape index: {}]
  %s6 = inlined_call_operand.hbm [shape: bf16[64,128], index: 6, kind: input, shape index: {}]
  %s7 = inlined_call_operand.vmem [shape: f32[1,128], index: 7, kind: input, shape index: {}]
  %s8 = inlined_call_operand.hbm [shape: f32[2,128], index: 8, kind: output, shape index: {}]
  %s9 = sld [smem:[#allocation0]]
  $region54: #{tpu_custom_call.1} parent=0
    _
  %s11 = ssub.s32 1, %s9
  %s12 = scalar_select 0, %s11, %s9
  $region1: #{tpu_custom_call.1} parent=0
    #allocation2 [shape = 'u8[4096]{0}', space=vmem, size = 0x1000, scoped, tag = 'input window, operand 1, single buffered']
    #allocation3 [shape = 's32[1]{0}', space=sflag, size = 0x4, scoped, tag = 'scoped memory for tpu_custom_call.1']
    #allocation4 [shape = 's32[1]{0}', space=sflag, size = 0x4, scoped, tag = 'scoped memory for tpu_custom_call.1']
    #allocation5 [shape = 'u8[2048]{0}', space=vmem, size = 0x800, scoped, tag = 'input window, operand 5, single buffered']
    #allocation6 [shape = 's32[1]{0}', space=sflag, size = 0x4, scoped, tag = 'scoped memory for tpu_custom_call.1']
    #allocation7 [shape = 'u8[16384]{0}', space=vmem, size = 0x4000, scoped, tag = 'input window, operand 6, single buffered']
    #allocation8 [shape = 'u8[1024]{0}', space=vmem, size = 0x400, scoped, tag = 'output window, operand 0, single buffered']
    %13 = vsyncpa [#allocation3], 0
    %14 = vsyncpa [#allocation6], 0
    %15 = vsyncpa [#allocation4], 0
    // Predicated region
    $region2: #{tpu_custom_call.1} parent=1 // pred_check
      _
    $region3: #{tpu_custom_call.1} parent=1 // pred_check_branch
      %17 = sbr.rel (0) target = $region5
    $region4: #{tpu_custom_call.1} parent=1 // pred_region
      _
    $region5: #{tpu_custom_call.1} parent=1 // pred_fallthru
      _
    // Predicated region
    $region6: #{tpu_custom_call.1} parent=1 // pred_check
      _
    $region7: #{tpu_custom_call.1} parent=1 // pred_check_branch
      %19 = sbr.rel (0) target = $region9
    $region8: #{tpu_custom_call.1} parent=1 // pred_region
      %21 = vsyncadd [#allocation3], 0
      %s22 = sshll.u32 %s1, 4
      %s23 = int_to_ptr.hbm [resolvable:$true] %s22
      %s24 = sshll.u32 [#allocation2], 4
      %s25 = int_to_ptr.vmem [resolvable:$true] %s24
      %30 = dma.hbm_to_vmem [thread:$0]  %s23, 128, %s25, [#allocation3], 64, 64, 4
    $region9: #{tpu_custom_call.1} parent=1 // pred_fallthru
      _
    // Predicated region
    $region10: #{tpu_custom_call.1} parent=1 // pred_check
      _
    $region11: #{tpu_custom_call.1} parent=1 // pred_check_branch
      %32 = sbr.rel (0) target = $region13
    $region12: #{tpu_custom_call.1} parent=1 // pred_region
      _
    $region13: #{tpu_custom_call.1} parent=1 // pred_fallthru
      _
    // Predicated region
    $region14: #{tpu_custom_call.1} parent=1 // pred_check
      _
    $region15: #{tpu_custom_call.1} parent=1 // pred_check_branch
      %34 = sbr.rel (0) target = $region17
    $region16: #{tpu_custom_call.1} parent=1 // pred_region
      _
    $region17: #{tpu_custom_call.1} parent=1 // pred_fallthru
      _
    // Predicated region
    $region18: #{tpu_custom_call.1} parent=1 // pred_check
      _
    $region19: #{tpu_custom_call.1} parent=1 // pred_check_branch
      %36 = sbr.rel (0) target = $region21
    $region20: #{tpu_custom_call.1} parent=1 // pred_region
      _
    $region21: #{tpu_custom_call.1} parent=1 // pred_fallthru
      _
    // Predicated region
    $region22: #{tpu_custom_call.1} parent=1 // pred_check
      _
    $region23: #{tpu_custom_call.1} parent=1 // pred_check_branch
      %38 = sbr.rel (0) target = $region25
    $region24: #{tpu_custom_call.1} parent=1 // pred_region
      %40 = vsyncadd [#allocation6], 0
      %s42 = sshll.u32 %s5, 4
      %s43 = int_to_ptr.hbm [resolvable:$true] %s42
      %s44 = sshll.u32 [#allocation5], 4
      %s45 = int_to_ptr.vmem [resolvable:$true] %s44
      %47 = dma.hbm_to_vmem [thread:$0]  %s43, 64, %s45, [#allocation6]
    $region25: #{tpu_custom_call.1} parent=1 // pred_fallthru
      _
    // Predicated region
    $region26: #{tpu_custom_call.1} parent=1 // pred_check
      _
    $region27: #{tpu_custom_call.1} parent=1 // pred_check_branch
      %49 = sbr.rel (0) target = $region29
    $region28: #{tpu_custom_call.1} parent=1 // pred_region
      %51 = vsyncadd [#allocation6], 0
      %s52 = sshll.u32 %s6, 4
      %s53 = int_to_ptr.hbm [resolvable:$true] %s52
      %s54 = sshll.u32 [#allocation7], 4
      %s55 = int_to_ptr.vmem [resolvable:$true] %s54
      %60 = dma.hbm_to_vmem [thread:$0]  %s53, 512, %s55, [#allocation6], 64, 64, 4
    $region29: #{tpu_custom_call.1} parent=1 // pred_fallthru
      _
    // Predicated region
    $region30: #{tpu_custom_call.1} parent=1 // pred_check
      _
    $region31: #{tpu_custom_call.1} parent=1 // pred_check_branch
      %62 = sbr.rel (0) target = $region33
    $region32: #{tpu_custom_call.1} parent=1 // pred_region
      _
    $region33: #{tpu_custom_call.1} parent=1 // pred_fallthru
      _
    // Predicated region
    $region34: #{tpu_custom_call.1} parent=1 // pred_check
      _
    $region35: #{tpu_custom_call.1} parent=1 // pred_check_branch
      %64 = sbr.rel (0) target = $region37
    $region36: #{tpu_custom_call.1} parent=1 // pred_region
      %66 = dma.done [#allocation3], 128
    $region37: #{tpu_custom_call.1} parent=1 // pred_fallthru
      _
    // Predicated region
    $region38: #{tpu_custom_call.1} parent=1 // pred_check
      _
    $region39: #{tpu_custom_call.1} parent=1 // pred_check_branch
      %68 = sbr.rel (0) target = $region41
    $region40: #{tpu_custom_call.1} parent=1 // pred_region
      %70 = dma.done [#allocation6], 64
    $region41: #{tpu_custom_call.1} parent=1 // pred_fallthru
      _
    // Predicated region
    $region42: #{tpu_custom_call.1} parent=1 // pred_check
      _
    $region43: #{tpu_custom_call.1} parent=1 // pred_check_branch
      %72 = sbr.rel (0) target = $region45
    $region44: #{tpu_custom_call.1} parent=1 // pred_region
      %74 = dma.done [#allocation6], 512
    $region45: #{tpu_custom_call.1} parent=1 // pred_fallthru
      _
    %v76 = vld [vmem:[%s0] sm:$0xff]
    %v77 = vld [vmem:[%s0 + $0x8] sm:$0xff]
    %v80 = vunpack.c.l.b16 %v76
    %v81 = vunpack.c.h.b16 %v76
    %v82 = vunpack.c.l.b16 %v77
    %v83 = vunpack.c.h.b16 %v77
    %v84 = vpack.c.b16 %v80, %v80
    %v85 = vpack.c.b16 %v81, %v81
    %v86 = vpack.c.b16 %v82, %v82
    %v87 = vpack.c.b16 %v83, %v83
    %88 = vrot.lane.b32.xlu0 %v84, 127
    %v89 = vpop.permute.xlu0 %88
    %90 = vrot.lane.b32.xlu0 %v85, 127
    %v91 = vpop.permute.xlu0 %90
    %92 = vrot.lane.b32.xlu0 %v86, 127
    %v93 = vpop.permute.xlu0 %92
    %94 = vrot.lane.b32.xlu0 %v87, 127
    %v95 = vpop.permute.xlu0 %94
    %vm96 = vcmask 1039360
    %v97 = vsel %vm96, %v89, %v91
    %v98 = vsel %vm96, %v91, %v93
    %v99 = vsel %vm96, %v93, %v95
    %vm100 = vcmask 1039360
    %v103 = vsel %vm100, %v95, %v89
    %104 = vrot.lane.b32.xlu0 %v84, 126
    %v105 = vpop.permute.xlu0 %104
    %106 = vrot.lane.b32.xlu0 %v85, 126
    %v107 = vpop.permute.xlu0 %106
    %108 = vrot.lane.b32.xlu0 %v86, 126
    %v109 = vpop.permute.xlu0 %108
    %110 = vrot.lane.b32.xlu0 %v87, 126
    %v111 = vpop.permute.xlu0 %110
    %vm112 = vcmask 1031168
    %v113 = vsel %vm112, %v105, %v107
    %v114 = vsel %vm112, %v107, %v109
    %v115 = vsel %vm112, %v109, %v111
    %vm116 = vcmask 1031168
    %v119 = vsel %vm116, %v111, %v105
    %120 = vrot.lane.b32.xlu0 %v84, 112
    %v121 = vpop.permute.xlu0 %120
    %122 = vrot.lane.b32.xlu0 %v85, 112
    %v123 = vpop.permute.xlu0 %122
    %124 = vrot.lane.b32.xlu0 %v86, 112
    %v125 = vpop.permute.xlu0 %124
    %126 = vrot.lane.b32.xlu0 %v87, 112
    %v127 = vpop.permute.xlu0 %126
    %vm128 = vcmask 916480
    %v129 = vsel %vm128, %v121, %v123
    %v130 = vsel %vm128, %v123, %v125
    %v131 = vsel %vm128, %v125, %v127
    %vm132 = vcmask 916480
    %v135 = vsel %vm132, %v127, %v121
    %136 = vrot.lane.b32.xlu0 %v84, 111
    %v137 = vpop.permute.xlu0 %136
    %138 = vrot.lane.b32.xlu0 %v85, 111
    %v139 = vpop.permute.xlu0 %138
    %140 = vrot.lane.b32.xlu0 %v86, 111
    %v141 = vpop.permute.xlu0 %140
    %142 = vrot.lane.b32.xlu0 %v87, 111
    %v143 = vpop.permute.xlu0 %142
    %vm144 = vcmask 908288
    %v145 = vsel %vm144, %v137, %v139
    %v146 = vsel %vm144, %v139, %v141
    %v147 = vsel %vm144, %v141, %v143
    %vm148 = vcmask 908288
    %v151 = vsel %vm148, %v143, %v137
    %152 = vrot.lane.b32.xlu0 %v84, 110
    %v153 = vpop.permute.xlu0 %152
    %154 = vrot.lane.b32.xlu0 %v85, 110
    %v155 = vpop.permute.xlu0 %154
    %156 = vrot.lane.b32.xlu0 %v86, 110
    %v157 = vpop.permute.xlu0 %156
    %158 = vrot.lane.b32.xlu0 %v87, 110
    %v159 = vpop.permute.xlu0 %158
    %vm160 = vcmask 900096
    %v161 = vsel %vm160, %v153, %v155
    %v162 = vsel %vm160, %v155, %v157
    %v163 = vsel %vm160, %v157, %v159
    %vm164 = vcmask 900096
    %v167 = vsel %vm164, %v159, %v153
    %168 = vrot.lane.b32.xlu0 %v84, 96
    %v169 = vpop.permute.xlu0 %168
    %170 = vrot.lane.b32.xlu0 %v85, 96
    %v171 = vpop.permute.xlu0 %170
    %172 = vrot.lane.b32.xlu0 %v86, 96
    %v173 = vpop.permute.xlu0 %172
    %174 = vrot.lane.b32.xlu0 %v87, 96
    %v175 = vpop.permute.xlu0 %174
    %vm176 = vcmask 785408
    %v177 = vsel %vm176, %v169, %v171
    %v178 = vsel %vm176, %v171, %v173
    %v179 = vsel %vm176, %v173, %v175
    %vm180 = vcmask 785408
    %v183 = vsel %vm180, %v175, %v169
    %184 = vrot.lane.b32.xlu0 %v84, 95
    %v185 = vpop.permute.xlu0 %184
    %186 = vrot.lane.b32.xlu0 %v85, 95
    %v187 = vpop.permute.xlu0 %186
    %188 = vrot.lane.b32.xlu0 %v86, 95
    %v189 = vpop.permute.xlu0 %188
    %190 = vrot.lane.b32.xlu0 %v87, 95
    %v191 = vpop.permute.xlu0 %190
    %vm192 = vcmask 777216
    %v193 = vsel %vm192, %v185, %v187
    %v194 = vsel %vm192, %v187, %v189
    %v195 = vsel %vm192, %v189, %v191
    %vm196 = vcmask 777216
    %v199 = vsel %vm196, %v191, %v185
    %200 = vrot.lane.b32.xlu0 %v84, 94
    %v201 = vpop.permute.xlu0 %200
    %202 = vrot.lane.b32.xlu0 %v85, 94
    %v203 = vpop.permute.xlu0 %202
    %204 = vrot.lane.b32.xlu0 %v86, 94
    %v205 = vpop.permute.xlu0 %204
    %206 = vrot.lane.b32.xlu0 %v87, 94
    %v207 = vpop.permute.xlu0 %206
    %vm208 = vcmask 769024
    %v209 = vsel %vm208, %v201, %v203
    %v210 = vsel %vm208, %v203, %v205
    %v211 = vsel %vm208, %v205, %v207
    %vm212 = vcmask 769024
    %v215 = vsel %vm212, %v207, %v201
    %v217 = vrot.slane %v97, 4
    %v218 = vrot.slane %v98, 4
    %v219 = vrot.slane %v99, 4
    %v220 = vrot.slane %v103, 4
    %v222 = vrot.slane %v129, 4
    %v223 = vrot.slane %v130, 4
    %v224 = vrot.slane %v131, 4
    %v225 = vrot.slane %v135, 4
    %v227 = vrot.slane %v161, 4
    %v228 = vrot.slane %v162, 4
    %v229 = vrot.slane %v163, 4
    %v230 = vrot.slane %v167, 4
    %v232 = vrot.slane %v193, 4
    %v233 = vrot.slane %v194, 4
    %v234 = vrot.slane %v195, 4
    %v235 = vrot.slane %v199, 4
    %vm236 = vcmask 1043456
    %v239 = vsel %vm236, %v84, %v217
    %v243 = vsel %vm236, %v85, %v218
    %v247 = vsel %vm236, %v86, %v219
    %v251 = vsel %vm236, %v87, %v220
    %v255 = vsel %vm236, %v113, %v222
    %v259 = vsel %vm236, %v114, %v223
    %v263 = vsel %vm236, %v115, %v224
    %v266 = vsel %vm236, %v119, %v225
    %v270 = vsel %vm236, %v145, %v227
    %v274 = vsel %vm236, %v146, %v228
    %v278 = vsel %vm236, %v147, %v229
    %v281 = vsel %vm236, %v151, %v230
    %v285 = vsel %vm236, %v177, %v232
    %v289 = vsel %vm236, %v178, %v233
    %v293 = vsel %vm236, %v179, %v234
    %v296 = vsel %vm236, %v183, %v235
    %v298 = vld [vmem:[#allocation2] sm:$0xf]
    %v299 = vld [vmem:[#allocation2 + $0x4] sm:$0xf]
    %v300 = vld [vmem:[%s2] sm:$0xff]
    %v301 = vld [vmem:[%s2 + $0x8] sm:$0xff]
    %303 = vset.pattern.permute.xlu0 0
    %304 = vperm.xlu0 %303, %v300
    %v305 = vpop.permute.xlu0 %304
    %308 = vset.pattern.permute.xlu0 0
    %309 = vperm.xlu0 %308, %v301
    %v310 = vpop.permute.xlu0 %309
    %v314 = vunpack.c.l.b16 %v298
    %v315 = vunpack.c.l.b16 %v299
    %v316 = vpack.c.b16 %v315, %v314
    %vm317 = vcmask 588800
    %v319 = vsel %vm317, %v316, 0
    %v322 = vsel %vm236, %v209, 0
    %v325 = vsel %vm236, %v210, 0
    %v328 = vsel %vm236, %v211, 0
    %v330 = vsel %vm236, %v215, 0
    %332 = vmatpush.bf16.msra.mxu0 0
    %333 = vmatpush.bf16.msra.mxu0 0
    %334 = vmatpush.bf16.msra.mxu0 0
    %335 = vmatpush.bf16.msra.mxu0 %v322
    %336 = vmatpush.bf16.msra.mxu0 %v285
    %337 = vmatpush.bf16.msra.mxu0 %v270
    %338 = vmatpush.bf16.msra.mxu0 %v255
    %339 = vmatpush.bf16.msra.mxu0 %v239
    %340 = vmatmul.bf16.gmra.mxu0 %v319
    %v341 = vpop.f32.mrf.mxu0
    %v342 = vadd.f32 %v305, %v341
    %v343 = vpop.f32.mrf.mxu0
    %v344 = vadd.f32 %v310, %v343
    %345 = vdwg.mxu0
    %346 = vmatpush.bf16.msra.mxu0 0
    %347 = vmatpush.bf16.msra.mxu0 0
    %348 = vmatpush.bf16.msra.mxu0 0
    %349 = vmatpush.bf16.msra.mxu0 %v325
    %350 = vmatpush.bf16.msra.mxu0 %v289
    %351 = vmatpush.bf16.msra.mxu0 %v274
    %352 = vmatpush.bf16.msra.mxu0 %v259
    %353 = vmatpush.bf16.msra.mxu0 %v243
    %354 = vmatmul.bf16.gmra.mxu0 %v319
    %v355 = vpop.f32.mrf.mxu0
    %v356 = vadd.f32 %v305, %v355
    %v357 = vpop.f32.mrf.mxu0
    %v358 = vadd.f32 %v310, %v357
    %359 = vdwg.mxu0
    %360 = vmatpush.bf16.msra.mxu0 0
    %361 = vmatpush.bf16.msra.mxu0 0
    %362 = vmatpush.bf16.msra.mxu0 0
    %363 = vmatpush.bf16.msra.mxu0 %v328
    %364 = vmatpush.bf16.msra.mxu0 %v293
    %365 = vmatpush.bf16.msra.mxu0 %v278
    %366 = vmatpush.bf16.msra.mxu0 %v263
    %367 = vmatpush.bf16.msra.mxu0 %v247
    %368 = vmatmul.bf16.gmra.mxu0 %v319
    %v369 = vpop.f32.mrf.mxu0
    %v370 = vadd.f32 %v305, %v369
    %v371 = vpop.f32.mrf.mxu0
    %v372 = vadd.f32 %v310, %v371
    %373 = vdwg.mxu0
    %374 = vmatpush.bf16.msra.mxu0 0
    %375 = vmatpush.bf16.msra.mxu0 0
    %376 = vmatpush.bf16.msra.mxu0 0
    %377 = vmatpush.bf16.msra.mxu0 %v330
    %378 = vmatpush.bf16.msra.mxu0 %v296
    %379 = vmatpush.bf16.msra.mxu0 %v281
    %380 = vmatpush.bf16.msra.mxu0 %v266
    %381 = vmatpush.bf16.msra.mxu0 %v251
    %382 = vmatmul.bf16.gmra.mxu0 %v319
    %v383 = vpop.f32.mrf.mxu0
    %v384 = vadd.f32 %v305, %v383
    %v385 = vpop.f32.mrf.mxu0
    %v386 = vadd.f32 %v310, %v385
    %387 = vdwg.mxu0
    %v388 = vmax.f32 %v342, 0.0
    %v389 = vmax.f32 %v356, 0.0
    %v390 = vmax.f32 %v370, 0.0
    %v391 = vmax.f32 %v384, 0.0
    %v392 = vmax.f32 %v344, 0.0
    %v393 = vmax.f32 %v358, 0.0
    %v394 = vmax.f32 %v372, 0.0
    %v395 = vmax.f32 %v386, 0.0
    %v396 = vpack.c.bf16 %v389, %v388
    %v397 = vpack.c.bf16 %v391, %v390
    %v398 = vpack.c.bf16 %v393, %v392
    %v399 = vpack.c.bf16 %v395, %v394
    %v404 = vunpack.c.l.b16 %v396
    %v405 = vunpack.c.h.b16 %v396
    %v406 = vunpack.c.l.b16 %v397
    %v407 = vunpack.c.h.b16 %v397
    %v408 = vunpack.c.l.b16 %v398
    %v409 = vunpack.c.h.b16 %v398
    %v410 = vunpack.c.l.b16 %v399
    %v411 = vunpack.c.h.b16 %v399
    %v412 = vpack.c.b16 %v408, %v404
    %v413 = vpack.c.b16 %v409, %v405
    %v414 = vpack.c.b16 %v410, %v406
    %v415 = vpack.c.b16 %v411, %v407
    %416 = vrot.lane.b32.xlu0 %v412, 127
    %v417 = vpop.permute.xlu0 %416
    %418 = vrot.lane.b32.xlu0 %v413, 127
    %v419 = vpop.permute.xlu0 %418
    %420 = vrot.lane.b32.xlu0 %v414, 127
    %v421 = vpop.permute.xlu0 %420
    %422 = vrot.lane.b32.xlu0 %v415, 127
    %v423 = vpop.permute.xlu0 %422
    %v424 = vsel %vm96, %v417, %v419
    %v425 = vsel %vm96, %v419, %v421
    %v426 = vsel %vm96, %v421, %v423
    %v432 = vsel %vm100, %v423, %v417
    %434 = vrot.lane.b32.xlu0 %v412, 126
    %v435 = vpop.permute.xlu0 %434
    %436 = vrot.lane.b32.xlu0 %v413, 126
    %v437 = vpop.permute.xlu0 %436
    %438 = vrot.lane.b32.xlu0 %v414, 126
    %v439 = vpop.permute.xlu0 %438
    %440 = vrot.lane.b32.xlu0 %v415, 126
    %v441 = vpop.permute.xlu0 %440
    %v442 = vsel %vm112, %v435, %v437
    %v443 = vsel %vm112, %v437, %v439
    %v444 = vsel %vm112, %v439, %v441
    %v450 = vsel %vm116, %v441, %v435
    %452 = vrot.lane.b32.xlu0 %v412, 112
    %v453 = vpop.permute.xlu0 %452
    %454 = vrot.lane.b32.xlu0 %v413, 112
    %v455 = vpop.permute.xlu0 %454
    %456 = vrot.lane.b32.xlu0 %v414, 112
    %v457 = vpop.permute.xlu0 %456
    %458 = vrot.lane.b32.xlu0 %v415, 112
    %v459 = vpop.permute.xlu0 %458
    %v460 = vsel %vm128, %v453, %v455
    %v461 = vsel %vm128, %v455, %v457
    %v462 = vsel %vm128, %v457, %v459
    %v468 = vsel %vm132, %v459, %v453
    %470 = vrot.lane.b32.xlu0 %v412, 111
    %v471 = vpop.permute.xlu0 %470
    %472 = vrot.lane.b32.xlu0 %v413, 111
    %v473 = vpop.permute.xlu0 %472
    %474 = vrot.lane.b32.xlu0 %v414, 111
    %v475 = vpop.permute.xlu0 %474
    %476 = vrot.lane.b32.xlu0 %v415, 111
    %v477 = vpop.permute.xlu0 %476
    %v478 = vsel %vm144, %v471, %v473
    %v479 = vsel %vm144, %v473, %v475
    %v480 = vsel %vm144, %v475, %v477
    %v486 = vsel %vm148, %v477, %v471
    %488 = vrot.lane.b32.xlu0 %v412, 110
    %v489 = vpop.permute.xlu0 %488
    %490 = vrot.lane.b32.xlu0 %v413, 110
    %v491 = vpop.permute.xlu0 %490
    %492 = vrot.lane.b32.xlu0 %v414, 110
    %v493 = vpop.permute.xlu0 %492
    %494 = vrot.lane.b32.xlu0 %v415, 110
    %v495 = vpop.permute.xlu0 %494
    %v496 = vsel %vm160, %v489, %v491
    %v497 = vsel %vm160, %v491, %v493
    %v498 = vsel %vm160, %v493, %v495
    %v504 = vsel %vm164, %v495, %v489
    %506 = vrot.lane.b32.xlu0 %v412, 96
    %v507 = vpop.permute.xlu0 %506
    %508 = vrot.lane.b32.xlu0 %v413, 96
    %v509 = vpop.permute.xlu0 %508
    %510 = vrot.lane.b32.xlu0 %v414, 96
    %v511 = vpop.permute.xlu0 %510
    %512 = vrot.lane.b32.xlu0 %v415, 96
    %v513 = vpop.permute.xlu0 %512
    %v514 = vsel %vm176, %v507, %v509
    %v515 = vsel %vm176, %v509, %v511
    %v516 = vsel %vm176, %v511, %v513
    %v522 = vsel %vm180, %v513, %v507
    %524 = vrot.lane.b32.xlu0 %v412, 95
    %v525 = vpop.permute.xlu0 %524
    %526 = vrot.lane.b32.xlu0 %v413, 95
    %v527 = vpop.permute.xlu0 %526
    %528 = vrot.lane.b32.xlu0 %v414, 95
    %v529 = vpop.permute.xlu0 %528
    %530 = vrot.lane.b32.xlu0 %v415, 95
    %v531 = vpop.permute.xlu0 %530
    %v532 = vsel %vm192, %v525, %v527
    %v533 = vsel %vm192, %v527, %v529
    %v534 = vsel %vm192, %v529, %v531
    %v540 = vsel %vm196, %v531, %v525
    %542 = vrot.lane.b32.xlu0 %v412, 94
    %v543 = vpop.permute.xlu0 %542
    %544 = vrot.lane.b32.xlu0 %v413, 94
    %v545 = vpop.permute.xlu0 %544
    %546 = vrot.lane.b32.xlu0 %v414, 94
    %v547 = vpop.permute.xlu0 %546
    %548 = vrot.lane.b32.xlu0 %v415, 94
    %v549 = vpop.permute.xlu0 %548
    %v550 = vsel %vm208, %v543, %v545
    %v551 = vsel %vm208, %v545, %v547
    %v552 = vsel %vm208, %v547, %v549
    %v558 = vsel %vm212, %v549, %v543
    %v564 = vld [vmem:[%s3] sm:$0xf]
    %v565 = vld [vmem:[%s4] sm:$0x7]
    %567 = vset.pattern.permute.xlu0 0
    %568 = vperm.xlu0 %567, %v565
    %v569 = vpop.permute.xlu0 %568
    %572 = vst [vmem:[#allocation1] ss:$4 sm:$0xff] %v564
    %v573 = vld.sshfl [vmem:[#allocation1] sm:$0xff pattern:$0x73625140]
    %v574 = vld.sshfl [vmem:[#allocation1 + $0x8] sm:$0xff pattern:$0x73625140]
    %vm576 = vcmask 130048
    %v577 = vsel %vm576, %v574, 0
    %579 = vmatpush.bf16.msra.mxu0 %v532
    %580 = vmatpush.bf16.msra.mxu0 %v514
    %581 = vmatpush.bf16.msra.mxu0 %v496
    %582 = vmatpush.bf16.msra.mxu0 %v478
    %583 = vmatpush.bf16.msra.mxu0 %v460
    %584 = vmatpush.bf16.msra.mxu0 %v442
    %585 = vmatpush.bf16.msra.mxu0 %v424
    %586 = vmatpush.bf16.msra.mxu0 %v412
    %587 = vmatmul.bf16.gmra.mxu0 %v573
    %v588 = vpop.f32.mrf.mxu0
    %v589 = vadd.f32 %v569, %v588
    %v590 = vpop.f32.mrf.mxu0
    %591 = vdwg.mxu0
    %592 = vmatpush.bf16.msra.mxu0 0
    %593 = vmatpush.bf16.msra.mxu0 0
    %594 = vmatpush.bf16.msra.mxu0 0
    %595 = vmatpush.bf16.msra.mxu0 0
    %596 = vmatpush.bf16.msra.mxu0 0
    %597 = vmatpush.bf16.msra.mxu0 0
    %598 = vmatpush.bf16.msra.mxu0 0
    %599 = vmatpush.bf16.msra.mxu0 %v550
    %600 = vmatmul.bf16.gmra.mxu0 %v577
    %v601 = vpop.f32.mrf.mxu0
    %v602 = vadd.f32 %v589, %v601
    %v603 = vpop.f32.mrf.mxu0
    %604 = vdwg.mxu0
    %605 = vmatpush.bf16.msra.mxu0 %v533
    %606 = vmatpush.bf16.msra.mxu0 %v515
    %607 = vmatpush.bf16.msra.mxu0 %v497
    %608 = vmatpush.bf16.msra.mxu0 %v479
    %609 = vmatpush.bf16.msra.mxu0 %v461
    %610 = vmatpush.bf16.msra.mxu0 %v443
    %611 = vmatpush.bf16.msra.mxu0 %v425
    %612 = vmatpush.bf16.msra.mxu0 %v413
    %613 = vmatmul.bf16.gmra.mxu0 %v573
    %v614 = vpop.f32.mrf.mxu0
    %v615 = vadd.f32 %v569, %v614
    %v616 = vpop.f32.mrf.mxu0
    %617 = vdwg.mxu0
    %618 = vmatpush.bf16.msra.mxu0 0
    %619 = vmatpush.bf16.msra.mxu0 0
    %620 = vmatpush.bf16.msra.mxu0 0
    %621 = vmatpush.bf16.msra.mxu0 0
    %622 = vmatpush.bf16.msra.mxu0 0
    %623 = vmatpush.bf16.msra.mxu0 0
    %624 = vmatpush.bf16.msra.mxu0 0
    %625 = vmatpush.bf16.msra.mxu0 %v551
    %626 = vmatmul.bf16.gmra.mxu0 %v577
    %v627 = vpop.f32.mrf.mxu0
    %v628 = vadd.f32 %v615, %v627
    %v629 = vpop.f32.mrf.mxu0
    %630 = vdwg.mxu0
    %631 = vmatpush.bf16.msra.mxu0 %v534
    %632 = vmatpush.bf16.msra.mxu0 %v516
    %633 = vmatpush.bf16.msra.mxu0 %v498
    %634 = vmatpush.bf16.msra.mxu0 %v480
    %635 = vmatpush.bf16.msra.mxu0 %v462
    %636 = vmatpush.bf16.msra.mxu0 %v444
    %637 = vmatpush.bf16.msra.mxu0 %v426
    %638 = vmatpush.bf16.msra.mxu0 %v414
    %639 = vmatmul.bf16.gmra.mxu0 %v573
    %v640 = vpop.f32.mrf.mxu0
    %v641 = vadd.f32 %v569, %v640
    %v642 = vpop.f32.mrf.mxu0
    %643 = vdwg.mxu0
    %644 = vmatpush.bf16.msra.mxu0 0
    %645 = vmatpush.bf16.msra.mxu0 0
    %646 = vmatpush.bf16.msra.mxu0 0
    %647 = vmatpush.bf16.msra.mxu0 0
    %648 = vmatpush.bf16.msra.mxu0 0
    %649 = vmatpush.bf16.msra.mxu0 0
    %650 = vmatpush.bf16.msra.mxu0 0
    %651 = vmatpush.bf16.msra.mxu0 %v552
    %652 = vmatmul.bf16.gmra.mxu0 %v577
    %v653 = vpop.f32.mrf.mxu0
    %v654 = vadd.f32 %v641, %v653
    %v655 = vpop.f32.mrf.mxu0
    %656 = vdwg.mxu0
    %657 = vmatpush.bf16.msra.mxu0 %v540
    %658 = vmatpush.bf16.msra.mxu0 %v522
    %659 = vmatpush.bf16.msra.mxu0 %v504
    %660 = vmatpush.bf16.msra.mxu0 %v486
    %661 = vmatpush.bf16.msra.mxu0 %v468
    %662 = vmatpush.bf16.msra.mxu0 %v450
    %663 = vmatpush.bf16.msra.mxu0 %v432
    %664 = vmatpush.bf16.msra.mxu0 %v415
    %665 = vmatmul.bf16.gmra.mxu0 %v573
    %v666 = vpop.f32.mrf.mxu0
    %v667 = vadd.f32 %v569, %v666
    %v668 = vpop.f32.mrf.mxu0
    %669 = vdwg.mxu0
    %670 = vmatpush.bf16.msra.mxu0 0
    %671 = vmatpush.bf16.msra.mxu0 0
    %672 = vmatpush.bf16.msra.mxu0 0
    %673 = vmatpush.bf16.msra.mxu0 0
    %674 = vmatpush.bf16.msra.mxu0 0
    %675 = vmatpush.bf16.msra.mxu0 0
    %676 = vmatpush.bf16.msra.mxu0 0
    %677 = vmatpush.bf16.msra.mxu0 %v558
    %678 = vmatmul.bf16.gmra.mxu0 %v577
    %v679 = vpop.f32.mrf.mxu0
    %v680 = vadd.f32 %v667, %v679
    %v681 = vpop.f32.mrf.mxu0
    %682 = vdwg.mxu0
    %v683 = vmax.f32 %v602, 0.0
    %v684 = vmax.f32 %v628, 0.0
    %v685 = vmax.f32 %v654, 0.0
    %v686 = vmax.f32 %v680, 0.0
    %v687 = vld [vmem:[#allocation5] sm:$0xf]
    %v689 = vperm.slane %v687, 0
    %v690 = vperm.slane %v687, 1
    %v691 = vperm.slane %v687, 2
    %v692 = vperm.slane %v687, 3
    %v697 = vmul.f32 %v683, %v689
    %v698 = vmul.f32 %v684, %v690
    %v699 = vmul.f32 %v685, %v691
    %v700 = vmul.f32 %v686, %v692
    %v703 = vrot.slane %v699, 7
    %v704 = vrot.slane %v700, 7
    %vm707 = vcmask 1040384
    %v708 = vsel %vm707, %v697, %v703
    %v709 = vsel %vm707, %v698, %v704
    %v712 = vrot.slane %v697, 1
    %v713 = vrot.slane %v698, 1
    %v716 = vsel %vm707, %v712, %v699
    %v717 = vsel %vm707, %v713, %v700
    %v718 = vrot.slane %v697, 2
    %v719 = vrot.slane %v698, 2
    %v722 = vrot.slane %v699, 1
    %v723 = vrot.slane %v700, 1
    %v726 = vsel %vm707, %v718, %v722
    %v727 = vsel %vm707, %v719, %v723
    %vm728 = vcmask 50176
    %v729 = vsel %vm728, %v708, -inf
    %730 = vmax.xlane.f32.xlu0 %v729
    %v731 = vpop.xlane.xlu0 %730
    %vm732 = vcmask 140336
    %v733 = vsel %vm732, %v708, -inf
    %734 = vmax.xlane.f32.xlu0 %v733
    %v735 = vpop.xlane.xlu0 %734
    %vm736 = vcmask 197768
    %v737 = vsel %vm736, %v708, -inf
    %738 = vmax.xlane.f32.xlu0 %v737
    %v739 = vpop.xlane.xlu0 %738
    %vm740 = vcmask 279744
    %v741 = vsel %vm740, %v708, -inf
    %742 = vmax.xlane.f32.xlu0 %v741
    %v743 = vpop.xlane.xlu0 %742
    %vm744 = vcmask 337176
    %v745 = vsel %vm744, %v708, -inf
    %746 = vmax.xlane.f32.xlu0 %v745
    %v747 = vpop.xlane.xlu0 %746
    %vm748 = vcmask 427336
    %v749 = vsel %vm748, %v708, -inf
    %750 = vmax.xlane.f32.xlu0 %v749
    %v751 = vpop.xlane.xlu0 %750
    %vm752 = vcmask 484768
    %v753 = vsel %vm752, %v708, -inf
    %754 = vmax.xlane.f32.xlu0 %v753
    %v755 = vpop.xlane.xlu0 %754
    %vm756 = vcmask 566744
    %v757 = vsel %vm756, %v708, -inf
    %758 = vmax.xlane.f32.xlu0 %v757
    %v759 = vpop.xlane.xlu0 %758
    %vm760 = vcmask 656944
    %v761 = vsel %vm760, %v708, -inf
    %762 = vmax.xlane.f32.xlu0 %v761
    %v763 = vpop.xlane.xlu0 %762
    %vm764 = vcmask 714368
    %v765 = vsel %vm764, %v708, -inf
    %766 = vmax.xlane.f32.xlu0 %v765
    %v767 = vpop.xlane.xlu0 %766
    %vm768 = vcmask 804536
    %v769 = vsel %vm768, %v708, -inf
    %770 = vmax.xlane.f32.xlu0 %v769
    %v771 = vpop.xlane.xlu0 %770
    %vm772 = vcmask 853776
    %v773 = vsel %vm772, %v708, -inf
    %774 = vmax.xlane.f32.xlu0 %v773
    %v775 = vpop.xlane.xlu0 %774
    %vm776 = vcmask 943944
    %v777 = vsel %vm776, %v708, -inf
    %778 = vmax.xlane.f32.xlu0 %v777
    %v779 = vpop.xlane.xlu0 %778
    %vm780 = vcmask 1001368
    %v781 = vsel %vm780, %v708, -inf
    %782 = vmax.xlane.f32.xlu0 %v781
    %v783 = vpop.xlane.xlu0 %782
    %vm784 = vcmask 1042384
    %v785 = vsel %vm784, %v708, -inf
    %vm786 = vcmask 41984
    %v787 = vsel %vm786, %v709, -inf
    %v788 = vmax.f32 %v785, %v787
    %789 = vmax.xlane.f32.xlu0 %v788
    %v790 = vpop.xlane.xlu0 %789
    %vm791 = vcmask 91176
    %v792 = vsel %vm791, %v709, -inf
    %793 = vmax.xlane.f32.xlu0 %v792
    %v794 = vpop.xlane.xlu0 %793
    %vm795 = vcmask 181376
    %v796 = vsel %vm795, %v709, -inf
    %797 = vmax.xlane.f32.xlu0 %v796
    %v798 = vpop.xlane.xlu0 %797
    %vm799 = vcmask 271536
    %v800 = vsel %vm799, %v709, -inf
    %801 = vmax.xlane.f32.xlu0 %v800
    %v802 = vpop.xlane.xlu0 %801
    %vm803 = vcmask 328968
    %v804 = vsel %vm803, %v709, -inf
    %805 = vmax.xlane.f32.xlu0 %v804
    %v806 = vpop.xlane.xlu0 %805
    %vm807 = vcmask 410944
    %v808 = vsel %vm807, %v709, -inf
    %809 = vmax.xlane.f32.xlu0 %v808
    %v810 = vpop.xlane.xlu0 %809
    %vm811 = vcmask 468376
    %v812 = vsel %vm811, %v709, -inf
    %813 = vmax.xlane.f32.xlu0 %v812
    %v814 = vpop.xlane.xlu0 %813
    %vm815 = vcmask 484808
    %v816 = vsel %vm815, %v709, -inf
    %817 = vmax.xlane.f32.xlu0 %v816
    %v818 = vpop.xlane.xlu0 %817
    %vm819 = vcmask 33792
    %v820 = vsel %vm819, %v716, -inf
    %821 = vmax.xlane.f32.xlu0 %v820
    %v822 = vpop.xlane.xlu0 %821
    %v823 = vmax.f32 %v818, %v822
    %vm824 = vcmask 91168
    %v825 = vsel %vm824, %v716, -inf
    %826 = vmax.xlane.f32.xlu0 %v825
    %v827 = vpop.xlane.xlu0 %826
    %vm828 = vcmask 173144
    %v829 = vsel %vm828, %v716, -inf
    %830 = vmax.xlane.f32.xlu0 %v829
    %v831 = vpop.xlane.xlu0 %830
    %vm832 = vcmask 263344
    %v833 = vsel %vm832, %v716, -inf
    %834 = vmax.xlane.f32.xlu0 %v833
    %v835 = vpop.xlane.xlu0 %834
    %vm836 = vcmask 320768
    %v837 = vsel %vm836, %v716, -inf
    %838 = vmax.xlane.f32.xlu0 %v837
    %v839 = vpop.xlane.xlu0 %838
    %vm840 = vcmask 410936
    %v841 = vsel %vm840, %v716, -inf
    %842 = vmax.xlane.f32.xlu0 %v841
    %v843 = vpop.xlane.xlu0 %842
    %vm844 = vcmask 460176
    %v845 = vsel %vm844, %v716, -inf
    %846 = vmax.xlane.f32.xlu0 %v845
    %v847 = vpop.xlane.xlu0 %846
    %vm848 = vcmask 550344
    %v849 = vsel %vm848, %v716, -inf
    %850 = vmax.xlane.f32.xlu0 %v849
    %v851 = vpop.xlane.xlu0 %850
    %vm852 = vcmask 607768
    %v853 = vsel %vm852, %v716, -inf
    %854 = vmax.xlane.f32.xlu0 %v853
    %v855 = vpop.xlane.xlu0 %854
    %vm856 = vcmask 697936
    %v857 = vsel %vm856, %v716, -inf
    %858 = vmax.xlane.f32.xlu0 %v857
    %v859 = vpop.xlane.xlu0 %858
    %vm860 = vcmask 747176
    %v861 = vsel %vm860, %v716, -inf
    %862 = vmax.xlane.f32.xlu0 %v861
    %v863 = vpop.xlane.xlu0 %862
    %vm864 = vcmask 837376
    %v865 = vsel %vm864, %v716, -inf
    %866 = vmax.xlane.f32.xlu0 %v865
    %v867 = vpop.xlane.xlu0 %866
    %vm868 = vcmask 927536
    %v869 = vsel %vm868, %v716, -inf
    %870 = vmax.xlane.f32.xlu0 %v869
    %v871 = vpop.xlane.xlu0 %870
    %vm872 = vcmask 984968
    %v873 = vsel %vm872, %v716, -inf
    %874 = vmax.xlane.f32.xlu0 %v873
    %v875 = vpop.xlane.xlu0 %874
    %vm876 = vcmask 1042368
    %v877 = vsel %vm876, %v716, -inf
    %vm878 = vcmask 17408
    %v879 = vsel %vm878, %v717, -inf
    %v880 = vmax.f32 %v877, %v879
    %881 = vmax.xlane.f32.xlu0 %v880
    %v882 = vpop.xlane.xlu0 %881
    %vm883 = vcmask 74776
    %v884 = vsel %vm883, %v717, -inf
    %885 = vmax.xlane.f32.xlu0 %v884
    %v886 = vpop.xlane.xlu0 %885
    %vm887 = vcmask 164936
    %v888 = vsel %vm887, %v717, -inf
    %889 = vmax.xlane.f32.xlu0 %v888
    %v890 = vpop.xlane.xlu0 %889
    %vm891 = vcmask 222368
    %v892 = vsel %vm891, %v717, -inf
    %893 = vmax.xlane.f32.xlu0 %v892
    %v894 = vpop.xlane.xlu0 %893
    %vm895 = vcmask 304344
    %v896 = vsel %vm895, %v717, -inf
    %897 = vmax.xlane.f32.xlu0 %v896
    %v898 = vpop.xlane.xlu0 %897
    %vm899 = vcmask 394544
    %v900 = vsel %vm899, %v717, -inf
    %901 = vmax.xlane.f32.xlu0 %v900
    %v902 = vpop.xlane.xlu0 %901
    %vm903 = vcmask 451968
    %v904 = vsel %vm903, %v717, -inf
    %905 = vmax.xlane.f32.xlu0 %v904
    %v906 = vpop.xlane.xlu0 %905
    %vm907 = vcmask 484792
    %v908 = vsel %vm907, %v717, -inf
    %909 = vmax.xlane.f32.xlu0 %v908
    %v910 = vpop.xlane.xlu0 %909
    %v911 = vsel %vm878, %v726, -inf
    %912 = vmax.xlane.f32.xlu0 %v911
    %v913 = vpop.xlane.xlu0 %912
    %v914 = vmax.f32 %v910, %v913
    %vm915 = vcmask 66576
    %v916 = vsel %vm915, %v726, -inf
    %917 = vmax.xlane.f32.xlu0 %v916
    %v918 = vpop.xlane.xlu0 %917
    %vm919 = vcmask 156744
    %v920 = vsel %vm919, %v726, -inf
    %921 = vmax.xlane.f32.xlu0 %v920
    %v922 = vpop.xlane.xlu0 %921
    %vm923 = vcmask 214168
    %v924 = vsel %vm923, %v726, -inf
    %925 = vmax.xlane.f32.xlu0 %v924
    %v926 = vpop.xlane.xlu0 %925
    %vm927 = vcmask 304336
    %v928 = vsel %vm927, %v726, -inf
    %929 = vmax.xlane.f32.xlu0 %v928
    %v930 = vpop.xlane.xlu0 %929
    %vm931 = vcmask 353576
    %v932 = vsel %vm931, %v726, -inf
    %933 = vmax.xlane.f32.xlu0 %v932
    %v934 = vpop.xlane.xlu0 %933
    %vm935 = vcmask 443776
    %v936 = vsel %vm935, %v726, -inf
    %937 = vmax.xlane.f32.xlu0 %v936
    %v938 = vpop.xlane.xlu0 %937
    %vm939 = vcmask 533936
    %v940 = vsel %vm939, %v726, -inf
    %941 = vmax.xlane.f32.xlu0 %v940
    %v942 = vpop.xlane.xlu0 %941
    %vm943 = vcmask 591368
    %v944 = vsel %vm943, %v726, -inf
    %945 = vmax.xlane.f32.xlu0 %v944
    %v946 = vpop.xlane.xlu0 %945
    %vm947 = vcmask 673344
    %v948 = vsel %vm947, %v726, -inf
    %949 = vmax.xlane.f32.xlu0 %v948
    %v950 = vpop.xlane.xlu0 %949
    %vm951 = vcmask 730776
    %v952 = vsel %vm951, %v726, -inf
    %953 = vmax.xlane.f32.xlu0 %v952
    %v954 = vpop.xlane.xlu0 %953
    %vm955 = vcmask 820936
    %v956 = vsel %vm955, %v726, -inf
    %957 = vmax.xlane.f32.xlu0 %v956
    %v958 = vpop.xlane.xlu0 %957
    %vm959 = vcmask 878368
    %v960 = vsel %vm959, %v726, -inf
    %961 = vmax.xlane.f32.xlu0 %v960
    %v962 = vpop.xlane.xlu0 %961
    %vm963 = vcmask 960344
    %v964 = vsel %vm963, %v726, -inf
    %965 = vmax.xlane.f32.xlu0 %v964
    %v966 = vpop.xlane.xlu0 %965
    %vm967 = vcmask 1042352
    %v968 = vsel %vm967, %v726, -inf
    %vm969 = vcmask 1024
    %v970 = vsel %vm969, %v727, -inf
    %v971 = vmax.f32 %v968, %v970
    %972 = vmax.xlane.f32.xlu0 %v971
    %v973 = vpop.xlane.xlu0 %972
    %vm974 = vcmask 58368
    %v975 = vsel %vm974, %v727, -inf
    %976 = vmax.xlane.f32.xlu0 %v975
    %v977 = vpop.xlane.xlu0 %976
    %vm978 = vcmask 148536
    %v979 = vsel %vm978, %v727, -inf
    %980 = vmax.xlane.f32.xlu0 %v979
    %v981 = vpop.xlane.xlu0 %980
    %vm982 = vcmask 197776
    %v983 = vsel %vm982, %v727, -inf
    %984 = vmax.xlane.f32.xlu0 %v983
    %v985 = vpop.xlane.xlu0 %984
    %vm986 = vcmask 287944
    %v987 = vsel %vm986, %v727, -inf
    %988 = vmax.xlane.f32.xlu0 %v987
    %v989 = vpop.xlane.xlu0 %988
    %vm990 = vcmask 345368
    %v991 = vsel %vm990, %v727, -inf
    %992 = vmax.xlane.f32.xlu0 %v991
    %v993 = vpop.xlane.xlu0 %992
    %vm994 = vcmask 435536
    %v995 = vsel %vm994, %v727, -inf
    %996 = vmax.xlane.f32.xlu0 %v995
    %v997 = vpop.xlane.xlu0 %996
    %vm998 = vcmask 484776
    %v999 = vsel %vm998, %v727, -inf
    %1000 = vmax.xlane.f32.xlu0 %v999
    %v1001 = vpop.xlane.xlu0 %1000
    %vm1002 = vcmask 7168
    %v1003 = vsel %vm1002, %v731, %v735
    %vm1004 = vcmask 15360
    %v1005 = vsel %vm1004, %v1003, %v739
    %vm1006 = vcmask 23552
    %v1007 = vsel %vm1006, %v1005, %v743
    %vm1008 = vcmask 31744
    %v1009 = vsel %vm1008, %v1007, %v747
    %vm1010 = vcmask 39936
    %v1011 = vsel %vm1010, %v1009, %v751
    %vm1012 = vcmask 48128
    %v1013 = vsel %vm1012, %v1011, %v755
    %vm1014 = vcmask 56320
    %v1015 = vsel %vm1014, %v1013, %v759
    %vm1016 = vcmask 64512
    %v1017 = vsel %vm1016, %v1015, %v763
    %vm1018 = vcmask 72704
    %v1019 = vsel %vm1018, %v1017, %v767
    %vm1020 = vcmask 80896
    %v1021 = vsel %vm1020, %v1019, %v771
    %vm1022 = vcmask 89088
    %v1023 = vsel %vm1022, %v1021, %v775
    %vm1024 = vcmask 97280
    %v1025 = vsel %vm1024, %v1023, %v779
    %vm1026 = vcmask 105472
    %v1027 = vsel %vm1026, %v1025, %v783
    %vm1028 = vcmask 113664
    %v1029 = vsel %vm1028, %v1027, %v790
    %vm1030 = vcmask 121856
    %v1031 = vsel %vm1030, %v1029, %v794
    %v1032 = vsel %vm1002, %v798, %v802
    %v1033 = vsel %vm1004, %v1032, %v806
    %v1034 = vsel %vm1006, %v1033, %v810
    %v1035 = vsel %vm1008, %v1034, %v814
    %v1036 = vsel %vm1010, %v1035, %v823
    %v1037 = vsel %vm1012, %v1036, %v827
    %v1038 = vsel %vm1014, %v1037, %v831
    %v1039 = vsel %vm1016, %v1038, %v835
    %v1040 = vsel %vm1018, %v1039, %v839
    %v1041 = vsel %vm1020, %v1040, %v843
    %v1042 = vsel %vm1022, %v1041, %v847
    %v1043 = vsel %vm1024, %v1042, %v851
    %v1044 = vsel %vm1026, %v1043, %v855
    %v1045 = vsel %vm1028, %v1044, %v859
    %v1046 = vsel %vm1030, %v1045, %v863
    %v1047 = vsel %vm1002, %v867, %v871
    %v1048 = vsel %vm1004, %v1047, %v875
    %v1049 = vsel %vm1006, %v1048, %v882
    %v1050 = vsel %vm1008, %v1049, %v886
    %v1051 = vsel %vm1010, %v1050, %v890
    %v1052 = vsel %vm1012, %v1051, %v894
    %v1053 = vsel %vm1014, %v1052, %v898
    %v1054 = vsel %vm1016, %v1053, %v902
    %v1055 = vsel %vm1018, %v1054, %v906
    %v1056 = vsel %vm1020, %v1055, %v914
    %v1057 = vsel %vm1022, %v1056, %v918
    %v1058 = vsel %vm1024, %v1057, %v922
    %v1059 = vsel %vm1026, %v1058, %v926
    %v1060 = vsel %vm1028, %v1059, %v930
    %v1061 = vsel %vm1030, %v1060, %v934
    %v1062 = vsel %vm1002, %v938, %v942
    %v1063 = vsel %vm1004, %v1062, %v946
    %v1064 = vsel %vm1006, %v1063, %v950
    %v1065 = vsel %vm1008, %v1064, %v954
    %v1066 = vsel %vm1010, %v1065, %v958
    %v1067 = vsel %vm1012, %v1066, %v962
    %v1068 = vsel %vm1014, %v1067, %v966
    %v1069 = vsel %vm1016, %v1068, %v973
    %v1070 = vsel %vm1018, %v1069, %v977
    %v1071 = vsel %vm1020, %v1070, %v981
    %v1072 = vsel %vm1022, %v1071, %v985
    %v1073 = vsel %vm1024, %v1072, %v989
    %v1074 = vsel %vm1026, %v1073, %v993
    %v1075 = vsel %vm1028, %v1074, %v997
    %v1076 = vsel %vm1030, %v1075, %v1001
    %1078 = vrot.lane.b32.xlu0 %v1046, 16
    %v1079 = vpop.permute.xlu0 %1078
    %1082 = vrot.lane.b32.xlu0 %v1061, 32
    %v1083 = vpop.permute.xlu0 %1082
    %1086 = vrot.lane.b32.xlu0 %v1076, 48
    %v1087 = vpop.permute.xlu0 %1086
    %v1089 = vsel %vm576, %v1031, %v1079
    %vm1090 = vcmask 261120
    %v1091 = vsel %vm1090, %v1089, %v1083
    %vm1092 = vcmask 392192
    %v1093 = vsel %vm1092, %v1091, %v1087
    %v1094 = vpack.c.bf16 %v1093, %v1093
    %v1095 = vld [vmem:[#allocation7] sm:$0xf]
    %v1096 = vld [vmem:[#allocation7 + $0x4] sm:$0xf]
    %v1097 = vld [vmem:[#allocation7 + $0x8] sm:$0xf]
    %v1098 = vld [vmem:[#allocation7 + $0xc] sm:$0xf]
    %v1099 = vld [vmem:[#allocation7 + $0x10] sm:$0xf]
    %v1100 = vld [vmem:[#allocation7 + $0x14] sm:$0xf]
    %v1101 = vld [vmem:[#allocation7 + $0x18] sm:$0xf]
    %v1102 = vld [vmem:[#allocation7 + $0x1c] sm:$0xf]
    %v1103 = vld [vmem:[%s7] sm:$0x1]
    %v1105 = vperm.slane %v1103, 0
    %v1115 = vunpack.c.l.b16 %v1095
    %v1116 = vunpack.c.l.b16 %v1096
    %v1117 = vunpack.c.l.b16 %v1097
    %v1118 = vunpack.c.l.b16 %v1098
    %v1119 = vunpack.c.l.b16 %v1099
    %v1120 = vunpack.c.l.b16 %v1100
    %v1121 = vunpack.c.l.b16 %v1101
    %v1122 = vunpack.c.l.b16 %v1102
    %v1123 = vpack.c.b16 %v1116, %v1115
    %v1124 = vpack.c.b16 %v1118, %v1117
    %v1125 = vpack.c.b16 %v1120, %v1119
    %v1126 = vpack.c.b16 %v1122, %v1121
    %vm1131 = vcmask 523264
    %v1133 = vsel %vm1131, %v1094, 0
    %1135 = vmatpush.bf16.msra.mxu0 0
    %1136 = vmatpush.bf16.msra.mxu0 0
    %1137 = vmatpush.bf16.msra.mxu0 0
    %1138 = vmatpush.bf16.msra.mxu0 0
    %1139 = vmatpush.bf16.msra.mxu0 %v1126
    %1140 = vmatpush.bf16.msra.mxu0 %v1125
    %1141 = vmatpush.bf16.msra.mxu0 %v1124
    %1142 = vmatpush.bf16.msra.mxu0 %v1123
    %1143 = vmatmul.bf16.gmra.mxu0 %v1133
    %v1144 = vpop.f32.mrf.mxu0
    %v1145 = vadd.f32 %v1105, %v1144
    %v1146 = vpop.f32.mrf.mxu0
    %1147 = vdwg.mxu0
    %1148 = vst [vmem:[#allocation8] sm:$0x3] %v1145
    // Predicated region
    $region46: #{tpu_custom_call.1} parent=1 // pred_check
      _
    $region47: #{tpu_custom_call.1} parent=1 // pred_check_branch
      %1150 = sbr.rel (0) target = $region49
    $region48: #{tpu_custom_call.1} parent=1 // pred_region
      %1152 = vsyncadd [#allocation4], 0
      %s1154 = sshll.u32 [#allocation8], 4
      %s1155 = int_to_ptr.vmem [resolvable:$true] %s1154
      %s1156 = sshll.u32 %s8, 4
      %s1157 = int_to_ptr.hbm [resolvable:$true] %s1156
      %1159 = dma.vmem_to_hbm [thread:$0]  %s1155, 32, %s1157, [#allocation4]
    $region49: #{tpu_custom_call.1} parent=1 // pred_fallthru
      _
    // Predicated region
    $region50: #{tpu_custom_call.1} parent=1 // pred_check
      _
    $region51: #{tpu_custom_call.1} parent=1 // pred_check_branch
      %1161 = sbr.rel (0) target = $region53
    $region52: #{tpu_custom_call.1} parent=1 // pred_region
      %1163 = dma.done [#allocation4], 32
    $region53: #{tpu_custom_call.1} parent=1 // pred_fallthru
      _
    %1164 = vsyncpa [#allocation3], 1
    %1165 = vsyncpa [#allocation6], 1
    %1166 = vsyncpa [#allocation4], 1

</llo_original>
